<compile_context>
chip_gen: v7x
topology: tpu7x:2x2x1
jax: 0.10.0
libtpu: 0.0.40
codegen_flags: <defaults>
</compile_context>

<pallas_src>
import functools

import jax
import jax.numpy as jnp
from jax.experimental import pallas as pl
from jax.experimental.pallas import tpu as pltpu


NEG_FILL = -9000000000000000.0      # same constant as the torch module
INV_TEMP = 1.0 / 0.0005             # softmax temperature from the module


# ---------------------------------------------------------------------------
# Fused MHGAT stack: all layers x all heads for one batch element per step
# ---------------------------------------------------------------------------
def _gat_stack_kernel(x_ref, adj_ref, w_ref, a1_ref, a2_ref, o_ref,
                      *, alpha, num_layers, num_heads):
    cur = x_ref[...].astype(jnp.float32)          # [H, N, F]
    adj_mask = adj_ref[...] > 0                   # [N, N] (shared by all layers)

    for l in range(num_layers):                   # static unroll (L is small)
        W = w_ref[l]                              # [H, F, F]
        a1 = a1_ref[l]                            # [H, 1, F]
        a2 = a2_ref[l]                            # [H, 1, F]

        # h[h,n,d] = sum_f cur[h,n,f] * W[h,f,d]            (batched MXU)
        h = jax.lax.dot_general(
            cur, W, (((2,), (1,)), ((0,), (0,))),
            preferred_element_type=jnp.float32)             # [H, N, F]

        # f1[h,n] = h[h,n,:] . a1[h,:]   (lane reduction -> column vector)
        f1 = jnp.sum(h * a1, axis=-1, keepdims=True)        # [H, N, 1]
        # f2[h,m] = h[h,m,:] . a2[h,:]   as a row vector via batched NT matmul
        f2 = jax.lax.dot_general(
            a2, h, (((2,), (2,)), ((0,), (0,))),
            preferred_element_type=jnp.float32)             # [H, 1, N]

        # e[h,i,j] = LeakyReLU(f1[h,i] + f2[h,j])
        e = f1 + f2                                          # [H, N, N]
        e = jnp.where(e > 0, e, alpha * e)

        # adjacency mask, temperature, numerically-stable row softmax
        logits = jnp.where(adj_mask[None], e, NEG_FILL) * INV_TEMP
        m = jnp.max(logits, axis=-1, keepdims=True)
        p = jnp.exp(logits - m)
        attn = p / jnp.sum(p, axis=-1, keepdims=True)        # [H, N, N]

        # h'[h,n,d] = sum_m attn[h,n,m] * h[h,m,d]           (batched MXU)
        hp = jax.lax.dot_general(
            attn, h, (((2,), (1,)), ((0,), (0,))),
            preferred_element_type=jnp.float32)              # [H, N, F]

        # ELU
        cur = jnp.where(hp > 0, hp, jnp.exp(jnp.minimum(hp, 0.0)) - 1.0)

        # write this layer's output into its channel slice (static slice)
        o_ref[l * num_heads:(l + 1) * num_heads] = cur.astype(o_ref.dtype)


def mhgat_stack(x, adj, W_stack, a1_stack, a2_stack, *, alpha=0.1):
    """x: [B,H,N,F], adj: [N,N], W: [L,H,F,F], a1/a2: [L,H,1,F] -> [B,L*H,N,F]"""
    B, H, N, F = x.shape
    L = W_stack.shape[0]
    kernel = functools.partial(_gat_stack_kernel, alpha=alpha,
                               num_layers=L, num_heads=H)
    return pl.pallas_call(
        kernel,
        out_shape=jax.ShapeDtypeStruct((B, L * H, N, F), x.dtype),
        grid=(B,),
        in_specs=[
            pl.BlockSpec((None, H, N, F), lambda b: (b, 0, 0, 0)),    # x
            pl.BlockSpec((N, N), lambda b: (0, 0)),                   # adj
            pl.BlockSpec((L, H, F, F), lambda b: (0, 0, 0, 0)),       # W stack
            pl.BlockSpec((L, H, 1, F), lambda b: (0, 0, 0, 0)),       # a1 stack
            pl.BlockSpec((L, H, 1, F), lambda b: (0, 0, 0, 0)),       # a2 stack
        ],
        out_specs=pl.BlockSpec((None, L * H, N, F), lambda b: (b, 0, 0, 0)),
        compiler_params=pltpu.CompilerParams(
            dimension_semantics=("parallel",)),
    )(x, adj, W_stack, a1_stack, a2_stack)


# ---------------------------------------------------------------------------
# 1x1 Conv2d ("linear" module): per-batch channel matmul over lane-dense N*F
# ---------------------------------------------------------------------------
def _conv1x1_kernel(x_ref, w_ref, b_ref, o_ref):
    # x: [C_in, M], w: [C_out, C_in], b: [C_out, 1] -> [C_out, M]
    y = jnp.dot(w_ref[...], x_ref[...], preferred_element_type=jnp.float32)
    o_ref[...] = (y + b_ref[...]).astype(o_ref.dtype)


def conv1x1(x, w, b):
    """x: [B, C_in, N, F], w: [C_out, C_in], b: [C_out] -> [B, C_out, N, F]"""
    B, C_in, N, F = x.shape
    C_out = w.shape[0]
    M = N * F
    xf = x.reshape(B, C_in, M)
    out = pl.pallas_call(
        _conv1x1_kernel,
        out_shape=jax.ShapeDtypeStruct((B, C_out, M), x.dtype),
        grid=(B,),
        in_specs=[
            pl.BlockSpec((None, C_in, M), lambda bi: (bi, 0, 0)),
            pl.BlockSpec((C_out, C_in), lambda bi: (0, 0)),
            pl.BlockSpec((C_out, 1), lambda bi: (0, 0)),
        ],
        out_specs=pl.BlockSpec((None, C_out, M), lambda bi: (bi, 0, 0)),
        compiler_params=pltpu.CompilerParams(dimension_semantics=("parallel",)),
    )(xf, w, b.reshape(C_out, 1))
    return out.reshape(B, C_out, N, F)


# ---------------------------------------------------------------------------
# Full GAT forward: fused layer stack, concat along heads, 1x1 conv
# ---------------------------------------------------------------------------
def gat_forward(x, adj, layers, mlp_w, mlp_b, *, alpha=0.1):
    B, H, N, F = x.shape
    W_stack = jnp.stack([w for (w, _, _) in layers], axis=0)             # [L,H,F,F]
    a1_stack = jnp.stack([a.reshape(H, 1, F) for (_, a, _) in layers])   # [L,H,1,F]
    a2_stack = jnp.stack([a.reshape(H, 1, F) for (_, _, a) in layers])   # [L,H,1,F]

    layer_out = mhgat_stack(x, adj, W_stack, a1_stack, a2_stack, alpha=alpha)
    ho = jnp.concatenate([x, layer_out], axis=1)          # [B, (L+1)*H, N, F]
    return conv1x1(ho, mlp_w, mlp_b)


# ---------------------------------------------------------------------------
# Plain-JAX reference (mirrors the torch module, eval mode / no dropout)
# ---------------------------------------------------------------------------
def gat_reference(x, adj, layers, mlp_w, mlp_b, *, alpha=0.1):
    hi = jax.lax.Precision.HIGHEST

    def layer_ref(xl, W, a1, a2):
        h = jnp.einsum('bhnf,hfd->bhnd', xl, W, precision=hi)
        f1 = jnp.einsum('bhnf,hf->bhn', h, a1, precision=hi)
        f2 = jnp.einsum('bhnf,hf->bhn', h, a2, precision=hi)
        e = f1[..., :, None] + f2[..., None, :]
        e = jnp.where(e > 0, e, alpha * e)
        e = jnp.where(adj[None, None] > 0, e, NEG_FILL)
        attn = jax.nn.softmax(e * INV_TEMP, axis=-1)
        hp = jnp.einsum('bhnm,bhmf->bhnf', attn, h, precision=hi)
        return jnp.where(hp > 0, hp, jnp.exp(jnp.minimum(hp, 0.0)) - 1.0)

    outs = [x]
    cur = x
    for (W, a1, a2) in layers:
        cur = layer_ref(cur, W, a1, a2)
        outs.append(cur)
    ho = jnp.concatenate(outs, axis=1)
    out = jnp.einsum('oc,bcnf->bonf', mlp_w, ho, precision=hi)
    return out + mlp_b[None, :, None, None]


if __name__ == "__main__":
    # batch, heads (= c_in), nodes, feature_dim; 2 GAT layers, c_out channels
    B, H, N, F = 2, 4, 16, 32
    num_layers, c_out = 2, 8
    alpha = 0.1

    key = jax.random.PRNGKey(0)
    keys = jax.random.split(key, 3 + 3 * num_layers)

    x = jax.random.normal(keys[0], (B, H, N, F), dtype=jnp.float32)

    # adjacency with self-loops so every row has at least one neighbour
    adj = (jax.random.uniform(keys[1], (N, N)) > 0.5).astype(jnp.float32)
    adj = jnp.maximum(adj, jnp.eye(N, dtype=jnp.float32))

    layers = []
    for li in range(num_layers):
        kw, k1, k2 = keys[2 + 3 * li], keys[3 + 3 * li], keys[4 + 3 * li]
        W = jax.random.normal(kw, (H, F, F), dtype=jnp.float32) * 0.25
        # small attention vectors keep the /0.0005-temperature softmax
        # well-conditioned so the numerical comparison is meaningful
        a1 = jax.random.normal(k1, (H, F), dtype=jnp.float32) * 1e-5
        a2 = jax.random.normal(k2, (H, F), dtype=jnp.float32) * 1e-5
        layers.append((W, a1, a2))

    km, kb = jax.random.split(keys[-1])
    mlp_w = jax.random.normal(km, (c_out, (num_layers + 1) * H),
                              dtype=jnp.float32) * 0.3
    mlp_b = jax.random.normal(kb, (c_out,), dtype=jnp.float32) * 0.1

    out = gat_forward(x, adj, layers, mlp_w, mlp_b, alpha=alpha)
    out = jax.block_until_ready(out)

    ref = gat_reference(x, adj, layers, mlp_w, mlp_b, alpha=alpha)
    assert out.shape == ref.shape, (out.shape, ref.shape)
    max_err = float(jnp.max(jnp.abs(out - ref)))
    assert jnp.allclose(out, ref, atol=2e-3, rtol=2e-3), f"mismatch, max_err={max_err}"

    print("KERNEL_OK")
</pallas_src>

<mosaic_0001>
module attributes {stable_mosaic.version = 11 : i64} {
  func.func @_gat_stack_kernel(%arg0: i32, %arg1: memref<1x4x16x32xf32, #tpu.memory_space<vmem>>, %arg2: memref<16x16xf32, #tpu.memory_space<vmem>>, %arg3: memref<2x4x32x32xf32, #tpu.memory_space<vmem>>, %arg4: memref<2x4x1x32xf32, #tpu.memory_space<vmem>>, %arg5: memref<2x4x1x32xf32, #tpu.memory_space<vmem>>, %arg6: memref<1x8x16x32xf32, #tpu.memory_space<vmem>>) attributes {dimension_semantics = [#tpu.dimension_semantics<parallel>], iteration_bounds = array<i64: 2>, scalar_prefetch = 0 : i64, scratch_operands = 0 : i64, tpu.core_type = #tpu.core_type<tc>, window_params = [{transform_indices = @transform_0, window_bounds = array<i64: 1, 4, 16, 32>}, {pipeline_mode = #tpu.pipeline_mode<synchronous>, transform_indices = @transform_1, window_bounds = array<i64: 16, 16>}, {pipeline_mode = #tpu.pipeline_mode<synchronous>, transform_indices = @transform_2, window_bounds = array<i64: 2, 4, 32, 32>}, {pipeline_mode = #tpu.pipeline_mode<synchronous>, transform_indices = @transform_3, window_bounds = array<i64: 2, 4, 1, 32>}, {pipeline_mode = #tpu.pipeline_mode<synchronous>, transform_indices = @transform_4, window_bounds = array<i64: 2, 4, 1, 32>}, {transform_indices = @transform_5, window_bounds = array<i64: 1, 8, 16, 32>}]} {
    %c0 = arith.constant 0 : index
    %c0_0 = arith.constant 0 : index
    %c0_1 = arith.constant 0 : index
    %c0_2 = arith.constant 0 : index
    %0 = vector.load %arg1[%c0, %c0_0, %c0_1, %c0_2] : memref<1x4x16x32xf32, #tpu.memory_space<vmem>>, vector<1x4x16x32xf32>
    %1 = vector.shape_cast %0 : vector<1x4x16x32xf32> to vector<4x16x32xf32>
    %c0_3 = arith.constant 0 : index
    %c0_4 = arith.constant 0 : index
    %2 = vector.load %arg2[%c0_3, %c0_4] : memref<16x16xf32, #tpu.memory_space<vmem>>, vector<16x16xf32>
    %cst = arith.constant 0.000000e+00 : f32
    %3 = vector.broadcast %cst : f32 to vector<16x16xf32>
    %4 = arith.cmpf ogt, %2, %3 : vector<16x16xf32>
    %c0_5 = arith.constant 0 : index
    %c0_6 = arith.constant 0 : index
    %c0_7 = arith.constant 0 : index
    %c0_8 = arith.constant 0 : index
    %5 = vector.load %arg3[%c0_5, %c0_6, %c0_7, %c0_8] : memref<2x4x32x32xf32, #tpu.memory_space<vmem>>, vector<1x4x32x32xf32>
    %6 = vector.shape_cast %5 : vector<1x4x32x32xf32> to vector<4x32x32xf32>
    %c0_9 = arith.constant 0 : index
    %c0_10 = arith.constant 0 : index
    %c0_11 = arith.constant 0 : index
    %c0_12 = arith.constant 0 : index
    %7 = vector.load %arg4[%c0_9, %c0_10, %c0_11, %c0_12] : memref<2x4x1x32xf32, #tpu.memory_space<vmem>>, vector<1x4x1x32xf32>
    %8 = vector.shape_cast %7 : vector<1x4x1x32xf32> to vector<4x1x32xf32>
    %c0_13 = arith.constant 0 : index
    %c0_14 = arith.constant 0 : index
    %c0_15 = arith.constant 0 : index
    %c0_16 = arith.constant 0 : index
    %9 = vector.load %arg5[%c0_13, %c0_14, %c0_15, %c0_16] : memref<2x4x1x32xf32, #tpu.memory_space<vmem>>, vector<1x4x1x32xf32>
    %10 = vector.shape_cast %9 : vector<1x4x1x32xf32> to vector<4x1x32xf32>
    %cst_17 = arith.constant dense<0.000000e+00> : vector<4x16x32xf32>
    %11 = tpu.matmul %1, %6, %cst_17 {dimension_numbers = #tpu.dot_dimension_numbers<[2], [1], [1], [2], [0, 0, 0, 1, 1, 2], [0], [0]>} : vector<4x16x32xf32>, vector<4x32x32xf32>, vector<4x16x32xf32> -> vector<4x16x32xf32>
    %12 = vector.broadcast %8 : vector<4x1x32xf32> to vector<4x16x32xf32>
    %13 = arith.mulf %11, %12 : vector<4x16x32xf32>
    %cst_18 = arith.constant dense<0.000000e+00> : vector<4x16xf32>
    %14 = vector.multi_reduction <add>, %13, %cst_18 [2] : vector<4x16x32xf32> to vector<4x16xf32>
    %15 = vector.shape_cast %14 : vector<4x16xf32> to vector<4x16x1xf32>
    %cst_19 = arith.constant dense<0.000000e+00> : vector<4x1x16xf32>
    %16 = tpu.matmul %10, %11, %cst_19 {dimension_numbers = #tpu.dot_dimension_numbers<[2], [2], [1], [1], [0, 0, 0, 1, 1, 1], [0], [0]>} : vector<4x1x32xf32>, vector<4x16x32xf32>, vector<4x1x16xf32> -> vector<4x1x16xf32>
    %17 = vector.broadcast %15 : vector<4x16x1xf32> to vector<4x16x16xf32>
    %18 = vector.broadcast %16 : vector<4x1x16xf32> to vector<4x16x16xf32>
    %19 = arith.addf %17, %18 : vector<4x16x16xf32>
    %cst_20 = arith.constant 0.000000e+00 : f32
    %20 = vector.broadcast %cst_20 : f32 to vector<4x16x16xf32>
    %21 = arith.cmpf ogt, %19, %20 : vector<4x16x16xf32>
    %cst_21 = arith.constant 1.000000e-01 : f32
    %22 = vector.broadcast %cst_21 : f32 to vector<4x16x16xf32>
    %23 = arith.mulf %22, %19 : vector<4x16x16xf32>
    %24 = arith.select %21, %19, %23 : vector<4x16x16xi1>, vector<4x16x16xf32>
    %25 = vector.shape_cast %4 : vector<16x16xi1> to vector<1x16x16xi1>
    %cst_22 = arith.constant -9.000000e+15 : f32
    %26 = vector.shape_cast %25 : vector<1x16x16xi1> to vector<1x16x16xi1>
    %27 = vector.broadcast %26 : vector<1x16x16xi1> to vector<4x16x16xi1>
    %28 = vector.broadcast %cst_22 : f32 to vector<4x16x16xf32>
    %29 = arith.select %27, %24, %28 : vector<4x16x16xi1>, vector<4x16x16xf32>
    %cst_23 = arith.constant 2.000000e+03 : f32
    %30 = vector.broadcast %cst_23 : f32 to vector<4x16x16xf32>
    %31 = arith.mulf %29, %30 : vector<4x16x16xf32>
    %cst_24 = arith.constant dense<0xFF800000> : vector<4x16xf32>
    %32 = vector.multi_reduction <maximumf>, %31, %cst_24 [2] : vector<4x16x16xf32> to vector<4x16xf32>
    %33 = vector.shape_cast %32 : vector<4x16xf32> to vector<4x16x1xf32>
    %34 = vector.broadcast %33 : vector<4x16x1xf32> to vector<4x16x16xf32>
    %35 = arith.subf %31, %34 : vector<4x16x16xf32>
    %36 = math.exp %35 : vector<4x16x16xf32>
    %cst_25 = arith.constant dense<0.000000e+00> : vector<4x16xf32>
    %37 = vector.multi_reduction <add>, %36, %cst_25 [2] : vector<4x16x16xf32> to vector<4x16xf32>
    %38 = vector.shape_cast %37 : vector<4x16xf32> to vector<4x16x1xf32>
    %39 = vector.broadcast %38 : vector<4x16x1xf32> to vector<4x16x16xf32>
    %40 = arith.divf %36, %39 : vector<4x16x16xf32>
    %cst_26 = arith.constant dense<0.000000e+00> : vector<4x16x32xf32>
    %41 = tpu.matmul %40, %11, %cst_26 {dimension_numbers = #tpu.dot_dimension_numbers<[2], [1], [1], [2], [0, 0, 0, 1, 1, 2], [0], [0]>} : vector<4x16x16xf32>, vector<4x16x32xf32>, vector<4x16x32xf32> -> vector<4x16x32xf32>
    %cst_27 = arith.constant 0.000000e+00 : f32
    %42 = vector.broadcast %cst_27 : f32 to vector<4x16x32xf32>
    %43 = arith.cmpf ogt, %41, %42 : vector<4x16x32xf32>
    %cst_28 = arith.constant 0.000000e+00 : f32
    %44 = vector.broadcast %cst_28 : f32 to vector<4x16x32xf32>
    %45 = arith.minimumf %41, %44 : vector<4x16x32xf32>
    %46 = math.exp %45 : vector<4x16x32xf32>
    %cst_29 = arith.constant 1.000000e+00 : f32
    %47 = vector.broadcast %cst_29 : f32 to vector<4x16x32xf32>
    %48 = arith.subf %46, %47 : vector<4x16x32xf32>
    %49 = arith.select %43, %41, %48 : vector<4x16x32xi1>, vector<4x16x32xf32>
    %c0_30 = arith.constant 0 : index
    %c0_31 = arith.constant 0 : index
    %c0_32 = arith.constant 0 : index
    %c0_33 = arith.constant 0 : index
    %50 = vector.load %arg6[%c0_30, %c0_31, %c0_32, %c0_33] : memref<1x8x16x32xf32, #tpu.memory_space<vmem>>, vector<1x4x16x32xf32>
    %51 = vector.shape_cast %50 : vector<1x4x16x32xf32> to vector<4x16x32xf32>
    %52 = vector.shape_cast %49 : vector<4x16x32xf32> to vector<1x4x16x32xf32>
    tpu.vector_store %arg6[%c0_30, %c0_31, %c0_32, %c0_33], %52 {strides = array<i32>} : memref<1x8x16x32xf32, #tpu.memory_space<vmem>>, vector<1x4x16x32xf32>,
    %c1 = arith.constant 1 : index
    %c0_34 = arith.constant 0 : index
    %c0_35 = arith.constant 0 : index
    %c0_36 = arith.constant 0 : index
    %53 = vector.load %arg3[%c1, %c0_34, %c0_35, %c0_36] : memref<2x4x32x32xf32, #tpu.memory_space<vmem>>, vector<1x4x32x32xf32>
    %54 = vector.shape_cast %53 : vector<1x4x32x32xf32> to vector<4x32x32xf32>
    %c1_37 = arith.constant 1 : index
    %c0_38 = arith.constant 0 : index
    %c0_39 = arith.constant 0 : index
    %c0_40 = arith.constant 0 : index
    %55 = vector.load %arg4[%c1_37, %c0_38, %c0_39, %c0_40] : memref<2x4x1x32xf32, #tpu.memory_space<vmem>>, vector<1x4x1x32xf32>
    %56 = vector.shape_cast %55 : vector<1x4x1x32xf32> to vector<4x1x32xf32>
    %c1_41 = arith.constant 1 : index
    %c0_42 = arith.constant 0 : index
    %c0_43 = arith.constant 0 : index
    %c0_44 = arith.constant 0 : index
    %57 = vector.load %arg5[%c1_41, %c0_42, %c0_43, %c0_44] : memref<2x4x1x32xf32, #tpu.memory_space<vmem>>, vector<1x4x1x32xf32>
    %58 = vector.shape_cast %57 : vector<1x4x1x32xf32> to vector<4x1x32xf32>
    %cst_45 = arith.constant dense<0.000000e+00> : vector<4x16x32xf32>
    %59 = tpu.matmul %49, %54, %cst_45 {dimension_numbers = #tpu.dot_dimension_numbers<[2], [1], [1], [2], [0, 0, 0, 1, 1, 2], [0], [0]>} : vector<4x16x32xf32>, vector<4x32x32xf32>, vector<4x16x32xf32> -> vector<4x16x32xf32>
    %60 = vector.broadcast %56 : vector<4x1x32xf32> to vector<4x16x32xf32>
    %61 = arith.mulf %59, %60 : vector<4x16x32xf32>
    %cst_46 = arith.constant dense<0.000000e+00> : vector<4x16xf32>
    %62 = vector.multi_reduction <add>, %61, %cst_46 [2] : vector<4x16x32xf32> to vector<4x16xf32>
    %63 = vector.shape_cast %62 : vector<4x16xf32> to vector<4x16x1xf32>
    %cst_47 = arith.constant dense<0.000000e+00> : vector<4x1x16xf32>
    %64 = tpu.matmul %58, %59, %cst_47 {dimension_numbers = #tpu.dot_dimension_numbers<[2], [2], [1], [1], [0, 0, 0, 1, 1, 1], [0], [0]>} : vector<4x1x32xf32>, vector<4x16x32xf32>, vector<4x1x16xf32> -> vector<4x1x16xf32>
    %65 = vector.broadcast %63 : vector<4x16x1xf32> to vector<4x16x16xf32>
    %66 = vector.broadcast %64 : vector<4x1x16xf32> to vector<4x16x16xf32>
    %67 = arith.addf %65, %66 : vector<4x16x16xf32>
    %cst_48 = arith.constant 0.000000e+00 : f32
    %68 = vector.broadcast %cst_48 : f32 to vector<4x16x16xf32>
    %69 = arith.cmpf ogt, %67, %68 : vector<4x16x16xf32>
    %cst_49 = arith.constant 1.000000e-01 : f32
    %70 = vector.broadcast %cst_49 : f32 to vector<4x16x16xf32>
    %71 = arith.mulf %70, %67 : vector<4x16x16xf32>
    %72 = arith.select %69, %67, %71 : vector<4x16x16xi1>, vector<4x16x16xf32>
    %73 = vector.shape_cast %4 : vector<16x16xi1> to vector<1x16x16xi1>
    %cst_50 = arith.constant -9.000000e+15 : f32
    %74 = vector.shape_cast %73 : vector<1x16x16xi1> to vector<1x16x16xi1>
    %75 = vector.broadcast %74 : vector<1x16x16xi1> to vector<4x16x16xi1>
    %76 = vector.broadcast %cst_50 : f32 to vector<4x16x16xf32>
    %77 = arith.select %75, %72, %76 : vector<4x16x16xi1>, vector<4x16x16xf32>
    %cst_51 = arith.constant 2.000000e+03 : f32
    %78 = vector.broadcast %cst_51 : f32 to vector<4x16x16xf32>
    %79 = arith.mulf %77, %78 : vector<4x16x16xf32>
    %cst_52 = arith.constant dense<0xFF800000> : vector<4x16xf32>
    %80 = vector.multi_reduction <maximumf>, %79, %cst_52 [2] : vector<4x16x16xf32> to vector<4x16xf32>
    %81 = vector.shape_cast %80 : vector<4x16xf32> to vector<4x16x1xf32>
    %82 = vector.broadcast %81 : vector<4x16x1xf32> to vector<4x16x16xf32>
    %83 = arith.subf %79, %82 : vector<4x16x16xf32>
    %84 = math.exp %83 : vector<4x16x16xf32>
    %cst_53 = arith.constant dense<0.000000e+00> : vector<4x16xf32>
    %85 = vector.multi_reduction <add>, %84, %cst_53 [2] : vector<4x16x16xf32> to vector<4x16xf32>
    %86 = vector.shape_cast %85 : vector<4x16xf32> to vector<4x16x1xf32>
    %87 = vector.broadcast %86 : vector<4x16x1xf32> to vector<4x16x16xf32>
    %88 = arith.divf %84, %87 : vector<4x16x16xf32>
    %cst_54 = arith.constant dense<0.000000e+00> : vector<4x16x32xf32>
    %89 = tpu.matmul %88, %59, %cst_54 {dimension_numbers = #tpu.dot_dimension_numbers<[2], [1], [1], [2], [0, 0, 0, 1, 1, 2], [0], [0]>} : vector<4x16x16xf32>, vector<4x16x32xf32>, vector<4x16x32xf32> -> vector<4x16x32xf32>
    %cst_55 = arith.constant 0.000000e+00 : f32
    %90 = vector.broadcast %cst_55 : f32 to vector<4x16x32xf32>
    %91 = arith.cmpf ogt, %89, %90 : vector<4x16x32xf32>
    %cst_56 = arith.constant 0.000000e+00 : f32
    %92 = vector.broadcast %cst_56 : f32 to vector<4x16x32xf32>
    %93 = arith.minimumf %89, %92 : vector<4x16x32xf32>
    %94 = math.exp %93 : vector<4x16x32xf32>
    %cst_57 = arith.constant 1.000000e+00 : f32
    %95 = vector.broadcast %cst_57 : f32 to vector<4x16x32xf32>
    %96 = arith.subf %94, %95 : vector<4x16x32xf32>
    %97 = arith.select %91, %89, %96 : vector<4x16x32xi1>, vector<4x16x32xf32>
    %c0_58 = arith.constant 0 : index
    %c4 = arith.constant 4 : index
    %c0_59 = arith.constant 0 : index
    %c0_60 = arith.constant 0 : index
    %98 = vector.load %arg6[%c0_58, %c4, %c0_59, %c0_60] : memref<1x8x16x32xf32, #tpu.memory_space<vmem>>, vector<1x4x16x32xf32>
    %99 = vector.shape_cast %98 : vector<1x4x16x32xf32> to vector<4x16x32xf32>
    %100 = vector.shape_cast %97 : vector<4x16x32xf32> to vector<1x4x16x32xf32>
    tpu.vector_store %arg6[%c0_58, %c4, %c0_59, %c0_60], %100 {strides = array<i32>} : memref<1x8x16x32xf32, #tpu.memory_space<vmem>>, vector<1x4x16x32xf32>,
    return
  }
  func.func @transform_0(%arg0: i32) -> (i32, i32, i32, i32) {
    %c0_i32 = arith.constant 0 : i32
    %c0_i32_0 = arith.constant 0 : i32
    %c0_i32_1 = arith.constant 0 : i32
    %c0_i32_2 = arith.constant 0 : i32
    return %arg0, %c0_i32, %c0_i32_0, %c0_i32_1 : i32, i32, i32, i32
  }
  func.func @transform_1(%arg0: i32) -> (i32, i32) {
    %c0_i32 = arith.constant 0 : i32
    %c0_i32_0 = arith.constant 0 : i32
    %c0_i32_1 = arith.constant 0 : i32
    return %c0_i32, %c0_i32_0 : i32, i32
  }
  func.func @transform_2(%arg0: i32) -> (i32, i32, i32, i32) {
    %c0_i32 = arith.constant 0 : i32
    %c0_i32_0 = arith.constant 0 : i32
    %c0_i32_1 = arith.constant 0 : i32
    %c0_i32_2 = arith.constant 0 : i32
    %c0_i32_3 = arith.constant 0 : i32
    return %c0_i32, %c0_i32_0, %c0_i32_1, %c0_i32_2 : i32, i32, i32, i32
  }
  func.func @transform_3(%arg0: i32) -> (i32, i32, i32, i32) {
    %c0_i32 = arith.constant 0 : i32
    %c0_i32_0 = arith.constant 0 : i32
    %c0_i32_1 = arith.constant 0 : i32
    %c0_i32_2 = arith.constant 0 : i32
    %c0_i32_3 = arith.constant 0 : i32
    return %c0_i32, %c0_i32_0, %c0_i32_1, %c0_i32_2 : i32, i32, i32, i32
  }
  func.func @transform_4(%arg0: i32) -> (i32, i32, i32, i32) {
    %c0_i32 = arith.constant 0 : i32
    %c0_i32_0 = arith.constant 0 : i32
    %c0_i32_1 = arith.constant 0 : i32
    %c0_i32_2 = arith.constant 0 : i32
    %c0_i32_3 = arith.constant 0 : i32
    return %c0_i32, %c0_i32_0, %c0_i32_1, %c0_i32_2 : i32, i32, i32, i32
  }
  func.func @transform_5(%arg0: i32) -> (i32, i32, i32, i32) {
    %c0_i32 = arith.constant 0 : i32
    %c0_i32_0 = arith.constant 0 : i32
    %c0_i32_1 = arith.constant 0 : i32
    %c0_i32_2 = arith.constant 0 : i32
    return %arg0, %c0_i32, %c0_i32_0, %c0_i32_1 : i32, i32, i32, i32
  }
}

</mosaic_0001>

<llo_original>
// kernel: tpu_custom_call.1
$region0: #{tpu_custom_call.1}
  #allocation0 [shape = 'u32[]', space=smem, size = 0x4, offset = 0x4, fixed_abs, tag = 'smem constant byte address 0x4 - core index']
  #allocation1 [shape = 'u32[144,128]{1,0:T(1,128)}', space=vmem, size = 0x12000, scoped, tag = 'internal scratch']
  %s0 = inlined_call_operand.hbm [shape: f32[2,4,16,32], index: 0, kind: input, shape index: {}]
  %s1 = inlined_call_operand.hbm [shape: f32[16,16], index: 1, kind: input, shape index: {}]
  %s2 = inlined_call_operand.hbm [shape: f32[2,4,32,32], index: 2, kind: input, shape index: {}]
  %s3 = inlined_call_operand.vmem [shape: f32[2,4,1,32], index: 3, kind: input, shape index: {}]
  %s4 = inlined_call_operand.hbm [shape: f32[2,4,1,32], index: 4, kind: input, shape index: {}]
  %s5 = inlined_call_operand.hbm [shape: f32[2,8,16,32], index: 5, kind: output, shape index: {}]
  %s6 = sld [smem:[#allocation0]]
  $region69: #{tpu_custom_call.1} parent=0
    _
  %s8 = ssub.s32 1, %s6
  %s9 = scalar_select 0, %s8, %s6
  $region1: #{tpu_custom_call.1} parent=0
    #allocation2 [shape = 'u8[65536]{0}', space=vmem, size = 0x10000, scoped, tag = 'input window, operand 0']
    #allocation3 [shape = 's32[2]{0}', space=sflag, size = 0x8, scoped, tag = 'scoped memory for tpu_custom_call.1']
    #allocation4 [shape = 's32[2]{0}', space=sflag, size = 0x8, scoped, tag = 'scoped memory for tpu_custom_call.1']
    #allocation5 [shape = 'u8[8192]{0}', space=vmem, size = 0x2000, scoped, tag = 'input window, operand 1, single buffered']
    #allocation6 [shape = 's32[1]{0}', space=sflag, size = 0x4, scoped, tag = 'scoped memory for tpu_custom_call.1']
    #allocation7 [shape = 'u8[131072]{0}', space=vmem, size = 0x20000, scoped, tag = 'input window, operand 2, single buffered']
    #allocation8 [shape = 'u8[4096]{0}', space=vmem, size = 0x1000, scoped, tag = 'input window, operand 4, single buffered']
    #allocation9 [shape = 's32[1]{0}', space=sflag, size = 0x4, scoped, tag = 'scoped memory for tpu_custom_call.1']
    #allocation10 [shape = 'u8[131072]{0}', space=vmem, size = 0x20000, scoped, tag = 'output window, operand 0']
    %10 = vsyncpa [#allocation3], 0
    %s11 = scalar_lea.sflag [#allocation3], 1
    %12 = vsyncpa %s11, 0
    %13 = vsyncpa [#allocation6], 0
    %14 = vsyncpa [#allocation9], 0
    %15 = vsyncpa [#allocation4], 0
    %s16 = scalar_lea.sflag [#allocation4], 1
    %17 = vsyncpa %s16, 0
    loop: start=0, step=1, limit=4
    $region2: #{tpu_custom_call.1} parent=1 // loop_pre_header
      _
    $region3: #{tpu_custom_call.1} parent=1 // loop_header
      %s19 = sphi 0, %s23
      %p20 = scmp.ge.s32.totalorder %s19, 4
      %s29 = sphi 0, %s31
      %s32 = sphi 0, %s29
      %s33 = sphi 0, %s32
      %s49 = sphi 0, %s33
      %s53 = sphi 0, %s53
      %s55 = sphi 0, %s53
      %s56 = sphi 0, %s55
      %s70 = sphi 0, %s56
      %s74 = sphi 0, %s74
      %s76 = sphi 0, %s74
      %s77 = sphi 0, %s76
      %s91 = sphi 0, %s77
      %s95 = sphi 0, %s95
      %s97 = sphi 0, %s95
      %s98 = sphi 0, %s97
      %s112 = sphi 0, %s98
      %s116 = sphi 0, %s116
      %s118 = sphi 0, %s116
      %s119 = sphi 0, %s118
      %s133 = sphi 0, %s119
      %s139 = sphi 0, %s141
      %s142 = sphi 0, %s139
      %s143 = sphi 0, %s142
      %s159 = sphi 0, %s143
    $region4: #{tpu_custom_call.1} parent=1 // loop_header_branch
      %22 = sbr.rel (%p20) target = $region8
    $region5: #{tpu_custom_call.1} parent=1 // loop_body
      %s24 = ssub.s32 %s19, 1
      %s25 = ssub.s32 %s19, 2
      %s26 = sadd.s32 %s19, 1
      %s27 = ssub.s32 %s19, %s26
      %p28 = scmp.eq.s32.totalorder %s27, 0
      %s30 = sadd.s32 %s29, 1
      %s31 = scalar_select %p28, %s29, %s30
      %p34 = pneg %p28
      %p35 = scmp.eq.s32.totalorder %s19, 1
      %p36 = por %p34, %p35
      %p37 = scmp.ne.s32.totalorder %s29, %s32
      %p38 = scmp.eq.s32.totalorder %s19, 0
      %p39 = por %p37, %p38
      %p40 = scmp.ne.s32.totalorder %s29, %s32
      %p41 = scmp.eq.s32.totalorder %s24, 1
      %p42 = por %p40, %p41
      %p43 = scmp.ne.s32.totalorder %s32, %s33
      %p44 = scmp.eq.s32.totalorder %s24, 0
      %p45 = por %p43, %p44
      %p46 = scmp.ne.s32.totalorder %s32, %s33
      %p47 = scmp.eq.s32.totalorder %s25, 1
      %p48 = por %p46, %p47
      %p50 = scmp.ne.s32.totalorder %s33, %s49
      %p51 = scmp.eq.s32.totalorder %s25, 0
      %p52 = por %p50, %p51
      %s54 = sadd.s32 %s53, 1
      %p57 = scmp.eq.s32.totalorder %s19, 1
      %p58 = scmp.ne.s32.totalorder %s53, %s55
      %p59 = scmp.eq.s32.totalorder %s19, 0
      %p60 = por %p58, %p59
      %p61 = scmp.ne.s32.totalorder %s53, %s55
      %p62 = scmp.eq.s32.totalorder %s24, 1
      %p63 = por %p61, %p62
      %p64 = scmp.ne.s32.totalorder %s55, %s56
      %p65 = scmp.eq.s32.totalorder %s24, 0
      %p66 = por %p64, %p65
      %p67 = scmp.ne.s32.totalorder %s55, %s56
      %p68 = scmp.eq.s32.totalorder %s25, 1
      %p69 = por %p67, %p68
      %p71 = scmp.ne.s32.totalorder %s56, %s70
      %p72 = scmp.eq.s32.totalorder %s25, 0
      %p73 = por %p71, %p72
      %s75 = sadd.s32 %s74, 1
      %p78 = scmp.eq.s32.totalorder %s19, 1
      %p79 = scmp.ne.s32.totalorder %s74, %s76
      %p80 = scmp.eq.s32.totalorder %s19, 0
      %p81 = por %p79, %p80
      %p82 = scmp.ne.s32.totalorder %s74, %s76
      %p83 = scmp.eq.s32.totalorder %s24, 1
      %p84 = por %p82, %p83
      %p85 = scmp.ne.s32.totalorder %s76, %s77
      %p86 = scmp.eq.s32.totalorder %s24, 0
      %p87 = por %p85, %p86
      %p88 = scmp.ne.s32.totalorder %s76, %s77
      %p89 = scmp.eq.s32.totalorder %s25, 1
      %p90 = por %p88, %p89
      %p92 = scmp.ne.s32.totalorder %s77, %s91
      %p93 = scmp.eq.s32.totalorder %s25, 0
      %p94 = por %p92, %p93
      %s96 = sadd.s32 %s95, 1
      %p99 = scmp.eq.s32.totalorder %s19, 1
      %p100 = scmp.ne.s32.totalorder %s95, %s97
      %p101 = scmp.eq.s32.totalorder %s19, 0
      %p102 = por %p100, %p101
      %p103 = scmp.ne.s32.totalorder %s95, %s97
      %p104 = scmp.eq.s32.totalorder %s24, 1
      %p105 = por %p103, %p104
      %p106 = scmp.ne.s32.totalorder %s97, %s98
      %p107 = scmp.eq.s32.totalorder %s24, 0
      %p108 = por %p106, %p107
      %p109 = scmp.ne.s32.totalorder %s97, %s98
      %p110 = scmp.eq.s32.totalorder %s25, 1
      %p111 = por %p109, %p110
      %p113 = scmp.ne.s32.totalorder %s98, %s112
      %p114 = scmp.eq.s32.totalorder %s25, 0
      %p115 = por %p113, %p114
      %s117 = sadd.s32 %s116, 1
      %p120 = scmp.eq.s32.totalorder %s19, 1
      %p121 = scmp.ne.s32.totalorder %s116, %s118
      %p122 = scmp.eq.s32.totalorder %s19, 0
      %p123 = por %p121, %p122
      %p124 = scmp.ne.s32.totalorder %s116, %s118
      %p125 = scmp.eq.s32.totalorder %s24, 1
      %p126 = por %p124, %p125
      %p127 = scmp.ne.s32.totalorder %s118, %s119
      %p128 = scmp.eq.s32.totalorder %s24, 0
      %p129 = por %p127, %p128
      %p130 = scmp.ne.s32.totalorder %s118, %s119
      %p131 = scmp.eq.s32.totalorder %s25, 1
      %p132 = por %p130, %p131
      %p134 = scmp.ne.s32.totalorder %s119, %s133
      %p135 = scmp.eq.s32.totalorder %s25, 0
      %p136 = por %p134, %p135
      %s137 = ssub.s32 %s19, %s26
      %p138 = scmp.eq.s32.totalorder %s137, 0
      %s140 = sadd.s32 %s139, 1
      %s141 = scalar_select %p138, %s139, %s140
      %p144 = pneg %p138
      %p145 = scmp.eq.s32.totalorder %s19, 1
      %p146 = por %p144, %p145
      %p147 = scmp.ne.s32.totalorder %s139, %s142
      %p148 = scmp.eq.s32.totalorder %s19, 0
      %p149 = por %p147, %p148
      %p150 = scmp.ne.s32.totalorder %s139, %s142
      %p151 = scmp.eq.s32.totalorder %s24, 1
      %p152 = por %p150, %p151
      %p153 = scmp.ne.s32.totalorder %s142, %s143
      %p154 = scmp.eq.s32.totalorder %s24, 0
      %p155 = por %p153, %p154
      %p156 = scmp.ne.s32.totalorder %s142, %s143
      %p157 = scmp.eq.s32.totalorder %s25, 1
      %p158 = por %p156, %p157
      %p160 = scmp.ne.s32.totalorder %s143, %s159
      %p161 = scmp.eq.s32.totalorder %s25, 0
      %p162 = por %p160, %p161
      %p163 = scmp.le.s32.totalorder 1, %s19
      %p164 = scmp.lt.s32.totalorder %s19, 3
      %p165 = pnand %p163, %p164
      %p166 = pneg %p165
      // Predicated region
      $region9: #{tpu_custom_call.1} parent=5 // pred_check
        _
      $region10: #{tpu_custom_call.1} parent=5 // pred_check_branch
        %168 = sbr.rel (%p165) target = $region12
      $region11: #{tpu_custom_call.1} parent=5 // pred_region
        %s169 = ssub.s32 %s19, 1
        // Predicated region
        $region13: #{tpu_custom_call.1} parent=11 // pred_check
          %p170 = pneg %p66
        $region14: #{tpu_custom_call.1} parent=11 // pred_check_branch
          %172 = sbr.rel (%p170) target = $region16
        $region15: #{tpu_custom_call.1} parent=11 // pred_region
          %s174 = ssub.s32 256, 256
          %175 = vsyncadd [#allocation6], %s174
          %s176 = sshll.u32 [#allocation5], 4
          %s177 = int_to_ptr.vmem [resolvable:$true] %s176
          %182 = dma.hbm_to_vmem [thread:$0]  %s1, 256, %s177, [#allocation6], 128, 128, 8
        $region16: #{tpu_custom_call.1} parent=11 // pred_fallthru
          _
        // Predicated region
        $region17: #{tpu_custom_call.1} parent=11 // pred_check
          %p183 = pneg %p87
        $region18: #{tpu_custom_call.1} parent=11 // pred_check_branch
          %185 = sbr.rel (%p183) target = $region20
        $region19: #{tpu_custom_call.1} parent=11 // pred_region
          %s187 = ssub.s32 4096, 4096
          %188 = vsyncadd [#allocation6], %s187
          %s189 = sshll.u32 [#allocation7], 4
          %s190 = int_to_ptr.vmem [resolvable:$true] %s189
          %195 = dma.hbm_to_vmem [thread:$0]  %s2, 4096, %s190, [#allocation6], 128, 128, 8
        $region20: #{tpu_custom_call.1} parent=11 // pred_fallthru
          _
        // Predicated region
        $region21: #{tpu_custom_call.1} parent=11 // pred_check
          %p196 = pneg %p108
        $region22: #{tpu_custom_call.1} parent=11 // pred_check_branch
          %198 = sbr.rel (%p196) target = $region24
        $region23: #{tpu_custom_call.1} parent=11 // pred_region
          _
        $region24: #{tpu_custom_call.1} parent=11 // pred_fallthru
          _
        // Predicated region
        $region25: #{tpu_custom_call.1} parent=11 // pred_check
          %p199 = pneg %p129
        $region26: #{tpu_custom_call.1} parent=11 // pred_check_branch
          %201 = sbr.rel (%p199) target = $region28
        $region27: #{tpu_custom_call.1} parent=11 // pred_region
          %s203 = ssub.s32 128, 128
          %204 = vsyncadd [#allocation9], %s203
          %s205 = sshll.u32 [#allocation8], 4
          %s206 = int_to_ptr.vmem [resolvable:$true] %s205
          %211 = dma.hbm_to_vmem [thread:$0]  %s4, 128, %s206, [#allocation9], 16, 16, 1
        $region28: #{tpu_custom_call.1} parent=11 // pred_fallthru
          _
      $region12: #{tpu_custom_call.1} parent=5 // pred_fallthru
        _
      %p212 = scmp.lt.s32.totalorder %s19, 2
      // Predicated region
      $region29: #{tpu_custom_call.1} parent=5 // pred_check
        %p213 = pneg %p212
      $region30: #{tpu_custom_call.1} parent=5 // pred_check_branch
        %215 = sbr.rel (%p213) target = $region32
      $region31: #{tpu_custom_call.1} parent=5 // pred_region
        // Predicated region
        $region33: #{tpu_custom_call.1} parent=31 // pred_check
          %p216 = pneg %p39
        $region34: #{tpu_custom_call.1} parent=31 // pred_check_branch
          %218 = sbr.rel (%p216) target = $region36
        $region35: #{tpu_custom_call.1} parent=31 // pred_region
          %s219 = sand.u32 %s29, 1
          %s220 = scalar_lea.sflag [#allocation3], %s219
          %s221 = sand.u32 %s29, 1
          %s222 = smul.addr %s221, 64
          %s223 = scalar_lea.vmem [#allocation2], %s222
          %s225 = ssub.s32 1024, 1024
          %226 = vsyncadd %s220, %s225
          %s227 = smul.addr %s19, 8
          %s228 = smul.addr %s227, 128
          %s229 = scalar_lea.hbm %s0, %s228
          %s230 = sshll.u32 %s223, 4
          %s231 = int_to_ptr.vmem [resolvable:$true] %s230
          %236 = dma.hbm_to_vmem [thread:$0]  %s229, 1024, %s231, %s220, 128, 128, 8
        $region36: #{tpu_custom_call.1} parent=31 // pred_fallthru
          _
      $region32: #{tpu_custom_call.1} parent=5 // pred_fallthru
        _
      %p237 = scmp.le.s32.totalorder 1, %s19
      %p238 = scmp.lt.s32.totalorder %s19, 3
      %p239 = pnand %p237, %p238
      %p240 = pneg %p239
      // Predicated region
      $region37: #{tpu_custom_call.1} parent=5 // pred_check
        _
      $region38: #{tpu_custom_call.1} parent=5 // pred_check_branch
        %242 = sbr.rel (%p239) target = $region40
      $region39: #{tpu_custom_call.1} parent=5 // pred_region
        %s243 = ssub.s32 %s19, 1
        %s244 = sand.u32 %s32, 1
        %s245 = scalar_lea.sflag [#allocation3], %s244
        %s246 = sand.u32 %s32, 1
        %s247 = smul.addr %s246, 64
        %s248 = scalar_lea.vmem [#allocation2], %s247
        // Predicated region
        $region41: #{tpu_custom_call.1} parent=39 // pred_check
          %p249 = pneg %p45
        $region42: #{tpu_custom_call.1} parent=39 // pred_check_branch
          %251 = sbr.rel (%p249) target = $region44
        $region43: #{tpu_custom_call.1} parent=39 // pred_region
          %252 = dma.done %s245, 1024
        $region44: #{tpu_custom_call.1} parent=39 // pred_fallthru
          _
        // Predicated region
        $region45: #{tpu_custom_call.1} parent=39 // pred_check
          %p253 = pneg %p66
        $region46: #{tpu_custom_call.1} parent=39 // pred_check_branch
          %255 = sbr.rel (%p253) target = $region48
        $region47: #{tpu_custom_call.1} parent=39 // pred_region
          %256 = dma.done [#allocation6], 256
        $region48: #{tpu_custom_call.1} parent=39 // pred_fallthru
          _
        // Predicated region
        $region49: #{tpu_custom_call.1} parent=39 // pred_check
          %p257 = pneg %p87
        $region50: #{tpu_custom_call.1} parent=39 // pred_check_branch
          %259 = sbr.rel (%p257) target = $region52
        $region51: #{tpu_custom_call.1} parent=39 // pred_region
          %260 = dma.done [#allocation6], 4096
        $region52: #{tpu_custom_call.1} parent=39 // pred_fallthru
          _
        // Predicated region
        $region53: #{tpu_custom_call.1} parent=39 // pred_check
          %p261 = pneg %p129
        $region54: #{tpu_custom_call.1} parent=39 // pred_check_branch
          %263 = sbr.rel (%p261) target = $region56
        $region55: #{tpu_custom_call.1} parent=39 // pred_region
          %264 = dma.done [#allocation9], 128
        $region56: #{tpu_custom_call.1} parent=39 // pred_fallthru
          _
        %s265 = sand.u32 %s32, 1
        %s266 = scalar_lea.sflag [#allocation3], %s265
        %s267 = sand.u32 %s32, 1
        %s268 = smul.addr %s267, 64
        %s269 = scalar_lea.vmem [#allocation2], %s268
        %p270 = pneg %p45
        %p271 = pneg %p42
        %p272 = pneg %p66
        %p273 = pneg %p63
        %p274 = pneg %p87
        %p275 = pneg %p84
        %p276 = pneg %p108
        %p277 = pneg %p105
        %p278 = pneg %p129
        %p279 = pneg %p126
        %p280 = pneg %p155
        %p281 = pneg %p152
        %s282 = sand.u32 %s142, 1
        %s283 = scalar_lea.sflag [#allocation4], %s282
        %s284 = sand.u32 %s142, 1
        %s285 = smul.addr %s284, 128
        %s286 = scalar_lea.vmem [#allocation10], %s285
        %v287 = vld [vmem:[%s248] sm:$0xff]
        %v288 = vld [vmem:[%s248 + $0x8] sm:$0xff]
        %v289 = vld [vmem:[%s248 + $0x10] sm:$0xff]
        %v290 = vld [vmem:[%s248 + $0x18] sm:$0xff]
        %v291 = vld [vmem:[%s248 + $0x20] sm:$0xff]
        %v292 = vld [vmem:[%s248 + $0x28] sm:$0xff]
        %v293 = vld [vmem:[%s248 + $0x30] sm:$0xff]
        %v294 = vld [vmem:[%s248 + $0x38] sm:$0xff]
        %v295 = vld [vmem:[#allocation5] sm:$0xff]
        %v296 = vld [vmem:[#allocation5 + $0x8] sm:$0xff]
        %vm297 = vcmp.gt.f32.partialorder %v295, 0.0
        %vm298 = vcmp.gt.f32.partialorder %v296, 0.0
        %v299 = vld [vmem:[#allocation7] sm:$0xff]
        %v300 = vld [vmem:[#allocation7 + $0x8] sm:$0xff]
        %v301 = vld [vmem:[#allocation7 + $0x10] sm:$0xff]
        %v302 = vld [vmem:[#allocation7 + $0x18] sm:$0xff]
        %v303 = vld [vmem:[#allocation7 + $0x20] sm:$0xff]
        %v304 = vld [vmem:[#allocation7 + $0x28] sm:$0xff]
        %v305 = vld [vmem:[#allocation7 + $0x30] sm:$0xff]
        %v306 = vld [vmem:[#allocation7 + $0x38] sm:$0xff]
        %v307 = vld [vmem:[#allocation7 + $0x40] sm:$0xff]
        %v308 = vld [vmem:[#allocation7 + $0x48] sm:$0xff]
        %v309 = vld [vmem:[#allocation7 + $0x50] sm:$0xff]
        %v310 = vld [vmem:[#allocation7 + $0x58] sm:$0xff]
        %v311 = vld [vmem:[#allocation7 + $0x60] sm:$0xff]
        %v312 = vld [vmem:[#allocation7 + $0x68] sm:$0xff]
        %v313 = vld [vmem:[#allocation7 + $0x70] sm:$0xff]
        %v314 = vld [vmem:[#allocation7 + $0x78] sm:$0xff]
        %v315 = vld [vmem:[%s3] sm:$0x1]
        %v316 = vld [vmem:[%s3 + $0x1] sm:$0x1]
        %v317 = vld [vmem:[%s3 + $0x2] sm:$0x1]
        %v318 = vld [vmem:[%s3 + $0x3] sm:$0x1]
        %v319 = vld [vmem:[#allocation8] sm:$0x1]
        %v320 = vld [vmem:[#allocation8 + $0x1] sm:$0x1]
        %v321 = vld [vmem:[#allocation8 + $0x2] sm:$0x1]
        %v322 = vld [vmem:[#allocation8 + $0x3] sm:$0x1]
        %vm323 = vcmask 261120
        %v325 = vsel %vm323, %v287, 0
        %v328 = vsel %vm323, %v288, 0
        %330 = vmatprep.subr.mxu0 0.0
        %331 = vmatpush1.msra.mxu0 %v299
        %332 = vmatprep.subr.mxu0 0.0
        %333 = vmatpush1.msra.mxu0 %v300
        %334 = vmatprep.subr.mxu0 0.0
        %335 = vmatpush1.msra.mxu0 %v301
        %336 = vmatprep.subr.mxu0 0.0
        %337 = vmatpush1.msra.mxu0 %v302
        %338 = vmatprep.subr.mxu0 0.0
        %339 = vmatpush1.msra.mxu0 0.0
        %340 = vmatprep.subr.mxu0 0.0
        %341 = vmatpush1.msra.mxu0 0.0
        %342 = vmatprep.subr.mxu0 0.0
        %343 = vmatpush1.msra.mxu0 0.0
        %344 = vmatprep.subr.mxu0 0.0
        %345 = vmatpush1.msra.mxu0 0.0
        %346 = vmatprep.subr.mxu0 0.0
        %347 = vmatpush1.msra.mxu0 0.0
        %348 = vmatprep.subr.mxu0 0.0
        %349 = vmatpush1.msra.mxu0 0.0
        %350 = vmatprep.subr.mxu0 0.0
        %351 = vmatpush1.msra.mxu0 0.0
        %352 = vmatprep.subr.mxu0 0.0
        %353 = vmatpush1.msra.mxu0 0.0
        %354 = vmatprep.subr.mxu0 0.0
        %355 = vmatpush1.msra.mxu0 0.0
        %356 = vmatprep.subr.mxu0 0.0
        %357 = vmatpush1.msra.mxu0 0.0
        %358 = vmatprep.subr.mxu0 0.0
        %359 = vmatpush1.msra.mxu0 0.0
        %360 = vmatprep.subr.mxu0 0.0
        %361 = vmatpush1.msra.mxu0 0.0
        %362 = vmatprep.subr.mxu0 0.0
        %363 = vmatpush1.msra.mxu0 0.0
        %364 = vmatprep.subr.mxu0 0.0
        %365 = vmatpush1.msra.mxu0 0.0
        %366 = vmatprep.subr.mxu0 0.0
        %367 = vmatpush1.msra.mxu0 0.0
        %368 = vmatprep.subr.mxu0 0.0
        %369 = vmatpush1.msra.mxu0 0.0
        %370 = vmatprep.subr.mxu0 0.0
        %371 = vmatpush1.msra.mxu0 0.0
        %372 = vmatprep.subr.mxu0 0.0
        %373 = vmatpush1.msra.mxu0 0.0
        %374 = vmatprep.subr.mxu0 0.0
        %375 = vmatpush1.msra.mxu0 0.0
        %376 = vmatprep.subr.mxu0 0.0
        %377 = vmatpush1.msra.mxu0 0.0
        %378 = vmatprep.subr.mxu0 0.0
        %379 = vmatpush1.msra.mxu0 0.0
        %380 = vmatprep.subr.mxu0 0.0
        %381 = vmatpush1.msra.mxu0 0.0
        %382 = vmatprep.subr.mxu0 0.0
        %383 = vmatpush1.msra.mxu0 0.0
        %384 = vmatprep.subr.mxu0 0.0
        %385 = vmatpush1.msra.mxu0 0.0
        %386 = vmatprep.subr.mxu0 0.0
        %387 = vmatpush1.msra.mxu0 0.0
        %388 = vmatprep.subr.mxu0 0.0
        %389 = vmatpush1.msra.mxu0 0.0
        %390 = vmatprep.subr.mxu0 0.0
        %391 = vmatpush1.msra.mxu0 0.0
        %392 = vmatprep.subr.mxu0 0.0
        %393 = vmatpush1.msra.mxu0 0.0
        %394 = vmatprep.mubr.f32.mxu0 0.0
        %395 = vmatmul.mubr.f32.gmra.mrb[0].mxu0 %v325
        %v396 = vpop.f32.mrb[0].mxu0
        %v397 = vadd.f32 0.0, %v396
        %v398 = vpop.f32.mrb[0].mxu0
        %399 = vmatprep.mubr.f32.mxu0 0.0
        %400 = vmatmul.mubr.f32.gmra.mrb[0].mxu0 %v328
        %v401 = vpop.f32.mrb[0].mxu0
        %v402 = vadd.f32 0.0, %v401
        %v403 = vpop.f32.mrb[0].mxu0
        %404 = vdwg.mxu0
        %v406 = vsel %vm323, %v289, 0
        %v409 = vsel %vm323, %v290, 0
        %411 = vmatprep.subr.mxu0 0.0
        %412 = vmatpush1.msra.mxu0 %v303
        %413 = vmatprep.subr.mxu0 0.0
        %414 = vmatpush1.msra.mxu0 %v304
        %415 = vmatprep.subr.mxu0 0.0
        %416 = vmatpush1.msra.mxu0 %v305
        %417 = vmatprep.subr.mxu0 0.0
        %418 = vmatpush1.msra.mxu0 %v306
        %419 = vmatprep.subr.mxu0 0.0
        %420 = vmatpush1.msra.mxu0 0.0
        %421 = vmatprep.subr.mxu0 0.0
        %422 = vmatpush1.msra.mxu0 0.0
        %423 = vmatprep.subr.mxu0 0.0
        %424 = vmatpush1.msra.mxu0 0.0
        %425 = vmatprep.subr.mxu0 0.0
        %426 = vmatpush1.msra.mxu0 0.0
        %427 = vmatprep.subr.mxu0 0.0
        %428 = vmatpush1.msra.mxu0 0.0
        %429 = vmatprep.subr.mxu0 0.0
        %430 = vmatpush1.msra.mxu0 0.0
        %431 = vmatprep.subr.mxu0 0.0
        %432 = vmatpush1.msra.mxu0 0.0
        %433 = vmatprep.subr.mxu0 0.0
        %434 = vmatpush1.msra.mxu0 0.0
        %435 = vmatprep.subr.mxu0 0.0
        %436 = vmatpush1.msra.mxu0 0.0
        %437 = vmatprep.subr.mxu0 0.0
        %438 = vmatpush1.msra.mxu0 0.0
        %439 = vmatprep.subr.mxu0 0.0
        %440 = vmatpush1.msra.mxu0 0.0
        %441 = vmatprep.subr.mxu0 0.0
        %442 = vmatpush1.msra.mxu0 0.0
        %443 = vmatprep.subr.mxu0 0.0
        %444 = vmatpush1.msra.mxu0 0.0
        %445 = vmatprep.subr.mxu0 0.0
        %446 = vmatpush1.msra.mxu0 0.0
        %447 = vmatprep.subr.mxu0 0.0
        %448 = vmatpush1.msra.mxu0 0.0
        %449 = vmatprep.subr.mxu0 0.0
        %450 = vmatpush1.msra.mxu0 0.0
        %451 = vmatprep.subr.mxu0 0.0
        %452 = vmatpush1.msra.mxu0 0.0
        %453 = vmatprep.subr.mxu0 0.0
        %454 = vmatpush1.msra.mxu0 0.0
        %455 = vmatprep.subr.mxu0 0.0
        %456 = vmatpush1.msra.mxu0 0.0
        %457 = vmatprep.subr.mxu0 0.0
        %458 = vmatpush1.msra.mxu0 0.0
        %459 = vmatprep.subr.mxu0 0.0
        %460 = vmatpush1.msra.mxu0 0.0
        %461 = vmatprep.subr.mxu0 0.0
        %462 = vmatpush1.msra.mxu0 0.0
        %463 = vmatprep.subr.mxu0 0.0
        %464 = vmatpush1.msra.mxu0 0.0
        %465 = vmatprep.subr.mxu0 0.0
        %466 = vmatpush1.msra.mxu0 0.0
        %467 = vmatprep.subr.mxu0 0.0
        %468 = vmatpush1.msra.mxu0 0.0
        %469 = vmatprep.subr.mxu0 0.0
        %470 = vmatpush1.msra.mxu0 0.0
        %471 = vmatprep.subr.mxu0 0.0
        %472 = vmatpush1.msra.mxu0 0.0
        %473 = vmatprep.subr.mxu0 0.0
        %474 = vmatpush1.msra.mxu0 0.0
        %475 = vmatprep.mubr.f32.mxu0 0.0
        %476 = vmatmul.mubr.f32.gmra.mrb[0].mxu0 %v406
        %v477 = vpop.f32.mrb[0].mxu0
        %v478 = vadd.f32 0.0, %v477
        %v479 = vpop.f32.mrb[0].mxu0
        %480 = vmatprep.mubr.f32.mxu0 0.0
        %481 = vmatmul.mubr.f32.gmra.mrb[0].mxu0 %v409
        %v482 = vpop.f32.mrb[0].mxu0
        %v483 = vadd.f32 0.0, %v482
        %v484 = vpop.f32.mrb[0].mxu0
        %485 = vdwg.mxu0
        %v487 = vsel %vm323, %v291, 0
        %v490 = vsel %vm323, %v292, 0
        %492 = vmatprep.subr.mxu0 0.0
        %493 = vmatpush1.msra.mxu0 %v307
        %494 = vmatprep.subr.mxu0 0.0
        %495 = vmatpush1.msra.mxu0 %v308
        %496 = vmatprep.subr.mxu0 0.0
        %497 = vmatpush1.msra.mxu0 %v309
        %498 = vmatprep.subr.mxu0 0.0
        %499 = vmatpush1.msra.mxu0 %v310
        %500 = vmatprep.subr.mxu0 0.0
        %501 = vmatpush1.msra.mxu0 0.0
        %502 = vmatprep.subr.mxu0 0.0
        %503 = vmatpush1.msra.mxu0 0.0
        %504 = vmatprep.subr.mxu0 0.0
        %505 = vmatpush1.msra.mxu0 0.0
        %506 = vmatprep.subr.mxu0 0.0
        %507 = vmatpush1.msra.mxu0 0.0
        %508 = vmatprep.subr.mxu0 0.0
        %509 = vmatpush1.msra.mxu0 0.0
        %510 = vmatprep.subr.mxu0 0.0
        %511 = vmatpush1.msra.mxu0 0.0
        %512 = vmatprep.subr.mxu0 0.0
        %513 = vmatpush1.msra.mxu0 0.0
        %514 = vmatprep.subr.mxu0 0.0
        %515 = vmatpush1.msra.mxu0 0.0
        %516 = vmatprep.subr.mxu0 0.0
        %517 = vmatpush1.msra.mxu0 0.0
        %518 = vmatprep.subr.mxu0 0.0
        %519 = vmatpush1.msra.mxu0 0.0
        %520 = vmatprep.subr.mxu0 0.0
        %521 = vmatpush1.msra.mxu0 0.0
        %522 = vmatprep.subr.mxu0 0.0
        %523 = vmatpush1.msra.mxu0 0.0
        %524 = vmatprep.subr.mxu0 0.0
        %525 = vmatpush1.msra.mxu0 0.0
        %526 = vmatprep.subr.mxu0 0.0
        %527 = vmatpush1.msra.mxu0 0.0
        %528 = vmatprep.subr.mxu0 0.0
        %529 = vmatpush1.msra.mxu0 0.0
        %530 = vmatprep.subr.mxu0 0.0
        %531 = vmatpush1.msra.mxu0 0.0
        %532 = vmatprep.subr.mxu0 0.0
        %533 = vmatpush1.msra.mxu0 0.0
        %534 = vmatprep.subr.mxu0 0.0
        %535 = vmatpush1.msra.mxu0 0.0
        %536 = vmatprep.subr.mxu0 0.0
        %537 = vmatpush1.msra.mxu0 0.0
        %538 = vmatprep.subr.mxu0 0.0
        %539 = vmatpush1.msra.mxu0 0.0
        %540 = vmatprep.subr.mxu0 0.0
        %541 = vmatpush1.msra.mxu0 0.0
        %542 = vmatprep.subr.mxu0 0.0
        %543 = vmatpush1.msra.mxu0 0.0
        %544 = vmatprep.subr.mxu0 0.0
        %545 = vmatpush1.msra.mxu0 0.0
        %546 = vmatprep.subr.mxu0 0.0
        %547 = vmatpush1.msra.mxu0 0.0
        %548 = vmatprep.subr.mxu0 0.0
        %549 = vmatpush1.msra.mxu0 0.0
        %550 = vmatprep.subr.mxu0 0.0
        %551 = vmatpush1.msra.mxu0 0.0
        %552 = vmatprep.subr.mxu0 0.0
        %553 = vmatpush1.msra.mxu0 0.0
        %554 = vmatprep.subr.mxu0 0.0
        %555 = vmatpush1.msra.mxu0 0.0
        %556 = vmatprep.mubr.f32.mxu0 0.0
        %557 = vmatmul.mubr.f32.gmra.mrb[0].mxu0 %v487
        %v558 = vpop.f32.mrb[0].mxu0
        %v559 = vadd.f32 0.0, %v558
        %v560 = vpop.f32.mrb[0].mxu0
        %561 = vmatprep.mubr.f32.mxu0 0.0
        %562 = vmatmul.mubr.f32.gmra.mrb[0].mxu0 %v490
        %v563 = vpop.f32.mrb[0].mxu0
        %v564 = vadd.f32 0.0, %v563
        %v565 = vpop.f32.mrb[0].mxu0
        %566 = vdwg.mxu0
        %v568 = vsel %vm323, %v293, 0
        %v571 = vsel %vm323, %v294, 0
        %573 = vmatprep.subr.mxu0 0.0
        %574 = vmatpush1.msra.mxu0 %v311
        %575 = vmatprep.subr.mxu0 0.0
        %576 = vmatpush1.msra.mxu0 %v312
        %577 = vmatprep.subr.mxu0 0.0
        %578 = vmatpush1.msra.mxu0 %v313
        %579 = vmatprep.subr.mxu0 0.0
        %580 = vmatpush1.msra.mxu0 %v314
        %581 = vmatprep.subr.mxu0 0.0
        %582 = vmatpush1.msra.mxu0 0.0
        %583 = vmatprep.subr.mxu0 0.0
        %584 = vmatpush1.msra.mxu0 0.0
        %585 = vmatprep.subr.mxu0 0.0
        %586 = vmatpush1.msra.mxu0 0.0
        %587 = vmatprep.subr.mxu0 0.0
        %588 = vmatpush1.msra.mxu0 0.0
        %589 = vmatprep.subr.mxu0 0.0
        %590 = vmatpush1.msra.mxu0 0.0
        %591 = vmatprep.subr.mxu0 0.0
        %592 = vmatpush1.msra.mxu0 0.0
        %593 = vmatprep.subr.mxu0 0.0
        %594 = vmatpush1.msra.mxu0 0.0
        %595 = vmatprep.subr.mxu0 0.0
        %596 = vmatpush1.msra.mxu0 0.0
        %597 = vmatprep.subr.mxu0 0.0
        %598 = vmatpush1.msra.mxu0 0.0
        %599 = vmatprep.subr.mxu0 0.0
        %600 = vmatpush1.msra.mxu0 0.0
        %601 = vmatprep.subr.mxu0 0.0
        %602 = vmatpush1.msra.mxu0 0.0
        %603 = vmatprep.subr.mxu0 0.0
        %604 = vmatpush1.msra.mxu0 0.0
        %605 = vmatprep.subr.mxu0 0.0
        %606 = vmatpush1.msra.mxu0 0.0
        %607 = vmatprep.subr.mxu0 0.0
        %608 = vmatpush1.msra.mxu0 0.0
        %609 = vmatprep.subr.mxu0 0.0
        %610 = vmatpush1.msra.mxu0 0.0
        %611 = vmatprep.subr.mxu0 0.0
        %612 = vmatpush1.msra.mxu0 0.0
        %613 = vmatprep.subr.mxu0 0.0
        %614 = vmatpush1.msra.mxu0 0.0
        %615 = vmatprep.subr.mxu0 0.0
        %616 = vmatpush1.msra.mxu0 0.0
        %617 = vmatprep.subr.mxu0 0.0
        %618 = vmatpush1.msra.mxu0 0.0
        %619 = vmatprep.subr.mxu0 0.0
        %620 = vmatpush1.msra.mxu0 0.0
        %621 = vmatprep.subr.mxu0 0.0
        %622 = vmatpush1.msra.mxu0 0.0
        %623 = vmatprep.subr.mxu0 0.0
        %624 = vmatpush1.msra.mxu0 0.0
        %625 = vmatprep.subr.mxu0 0.0
        %626 = vmatpush1.msra.mxu0 0.0
        %627 = vmatprep.subr.mxu0 0.0
        %628 = vmatpush1.msra.mxu0 0.0
        %629 = vmatprep.subr.mxu0 0.0
        %630 = vmatpush1.msra.mxu0 0.0
        %631 = vmatprep.subr.mxu0 0.0
        %632 = vmatpush1.msra.mxu0 0.0
        %633 = vmatprep.subr.mxu0 0.0
        %634 = vmatpush1.msra.mxu0 0.0
        %635 = vmatprep.subr.mxu0 0.0
        %636 = vmatpush1.msra.mxu0 0.0
        %637 = vmatprep.mubr.f32.mxu0 0.0
        %638 = vmatmul.mubr.f32.gmra.mrb[0].mxu0 %v568
        %v639 = vpop.f32.mrb[0].mxu0
        %v640 = vadd.f32 0.0, %v639
        %v641 = vpop.f32.mrb[0].mxu0
        %642 = vmatprep.mubr.f32.mxu0 0.0
        %643 = vmatmul.mubr.f32.gmra.mrb[0].mxu0 %v571
        %v644 = vpop.f32.mrb[0].mxu0
        %v645 = vadd.f32 0.0, %v644
        %v646 = vpop.f32.mrb[0].mxu0
        %647 = vdwg.mxu0
        %v652 = vlaneseq
        %v653 = vshrl.u32 %v652, 7
        %v654 = vsub.s32 0, %v653
        %v655 = vrot.slane %v315, %v654
        %v656 = vlaneseq
        %v657 = vshrl.u32 %v656, 7
        %v658 = vsub.s32 0, %v657
        %v659 = vrot.slane %v316, %v658
        %v660 = vlaneseq
        %v661 = vshrl.u32 %v660, 7
        %v662 = vsub.s32 0, %v661
        %v663 = vrot.slane %v317, %v662
        %v664 = vlaneseq
        %v665 = vshrl.u32 %v664, 7
        %v666 = vsub.s32 0, %v665
        %v667 = vrot.slane %v318, %v666
        %v672 = vmul.f32 %v397, %v655
        %v673 = vmul.f32 %v402, %v655
        %v674 = vmul.f32 %v478, %v659
        %v675 = vmul.f32 %v483, %v659
        %v676 = vmul.f32 %v559, %v663
        %v677 = vmul.f32 %v564, %v663
        %v678 = vmul.f32 %v640, %v667
        %v679 = vmul.f32 %v645, %v667
        %v680 = vsel %vm323, %v672, 0.0
        %681 = vadd.xlane.f32.xlu0 %v680
        %v682 = vpop.xlane.xlu0 %681
        %v683 = vsel %vm323, %v673, 0.0
        %684 = vadd.xlane.f32.xlu0 %v683
        %v685 = vpop.xlane.xlu0 %684
        %v686 = vsel %vm323, %v674, 0.0
        %687 = vadd.xlane.f32.xlu0 %v686
        %v688 = vpop.xlane.xlu0 %687
        %v689 = vsel %vm323, %v675, 0.0
        %690 = vadd.xlane.f32.xlu0 %v689
        %v691 = vpop.xlane.xlu0 %690
        %v692 = vsel %vm323, %v676, 0.0
        %693 = vadd.xlane.f32.xlu0 %v692
        %v694 = vpop.xlane.xlu0 %693
        %v695 = vsel %vm323, %v677, 0.0
        %696 = vadd.xlane.f32.xlu0 %v695
        %v697 = vpop.xlane.xlu0 %696
        %v698 = vsel %vm323, %v678, 0.0
        %699 = vadd.xlane.f32.xlu0 %v698
        %v700 = vpop.xlane.xlu0 %699
        %v701 = vsel %vm323, %v679, 0.0
        %702 = vadd.xlane.f32.xlu0 %v701
        %v703 = vpop.xlane.xlu0 %702
        %v705 = vsel %vm323, %v319, 0
        %v708 = vsel %vm323, %v397, 0
        %v711 = vsel %vm323, %v402, 0
        %713 = vmatprep.subr.mxu0 0.0
        %714 = vmatpush1.xpose.msra.mxu0 %v708
        %715 = vmatprep.subr.mxu0 0.0
        %716 = vmatpush1.xpose.msra.mxu0 %v711
        %717 = vmatprep.subr.mxu0 0.0
        %718 = vmatpush1.xpose.msra.mxu0 0.0
        %719 = vmatprep.subr.mxu0 0.0
        %720 = vmatpush1.xpose.msra.mxu0 0.0
        %721 = vmatprep.subr.mxu0 0.0
        %722 = vmatpush1.xpose.msra.mxu0 0.0
        %723 = vmatprep.subr.mxu0 0.0
        %724 = vmatpush1.xpose.msra.mxu0 0.0
        %725 = vmatprep.subr.mxu0 0.0
        %726 = vmatpush1.xpose.msra.mxu0 0.0
        %727 = vmatprep.subr.mxu0 0.0
        %728 = vmatpush1.xpose.msra.mxu0 0.0
        %729 = vmatprep.subr.mxu0 0.0
        %730 = vmatpush1.xpose.msra.mxu0 0.0
        %731 = vmatprep.subr.mxu0 0.0
        %732 = vmatpush1.xpose.msra.mxu0 0.0
        %733 = vmatprep.subr.mxu0 0.0
        %734 = vmatpush1.xpose.msra.mxu0 0.0
        %735 = vmatprep.subr.mxu0 0.0
        %736 = vmatpush1.xpose.msra.mxu0 0.0
        %737 = vmatprep.subr.mxu0 0.0
        %738 = vmatpush1.xpose.msra.mxu0 0.0
        %739 = vmatprep.subr.mxu0 0.0
        %740 = vmatpush1.xpose.msra.mxu0 0.0
        %741 = vmatprep.subr.mxu0 0.0
        %742 = vmatpush1.xpose.msra.mxu0 0.0
        %743 = vmatprep.subr.mxu0 0.0
        %744 = vmatpush1.xpose.msra.mxu0 0.0
        %745 = vmatprep.subr.mxu0 0.0
        %746 = vmatpush1.xpose.msra.mxu0 0.0
        %747 = vmatprep.subr.mxu0 0.0
        %748 = vmatpush1.xpose.msra.mxu0 0.0
        %749 = vmatprep.subr.mxu0 0.0
        %750 = vmatpush1.xpose.msra.mxu0 0.0
        %751 = vmatprep.subr.mxu0 0.0
        %752 = vmatpush1.xpose.msra.mxu0 0.0
        %753 = vmatprep.subr.mxu0 0.0
        %754 = vmatpush1.xpose.msra.mxu0 0.0
        %755 = vmatprep.subr.mxu0 0.0
        %756 = vmatpush1.xpose.msra.mxu0 0.0
        %757 = vmatprep.subr.mxu0 0.0
        %758 = vmatpush1.xpose.msra.mxu0 0.0
        %759 = vmatprep.subr.mxu0 0.0
        %760 = vmatpush1.xpose.msra.mxu0 0.0
        %761 = vmatprep.subr.mxu0 0.0
        %762 = vmatpush1.xpose.msra.mxu0 0.0
        %763 = vmatprep.subr.mxu0 0.0
        %764 = vmatpush1.xpose.msra.mxu0 0.0
        %765 = vmatprep.subr.mxu0 0.0
        %766 = vmatpush1.xpose.msra.mxu0 0.0
        %767 = vmatprep.subr.mxu0 0.0
        %768 = vmatpush1.xpose.msra.mxu0 0.0
        %769 = vmatprep.subr.mxu0 0.0
        %770 = vmatpush1.xpose.msra.mxu0 0.0
        %771 = vmatprep.subr.mxu0 0.0
        %772 = vmatpush1.xpose.msra.mxu0 0.0
        %773 = vmatprep.subr.mxu0 0.0
        %774 = vmatpush1.xpose.msra.mxu0 0.0
        %775 = vmatprep.subr.mxu0 0.0
        %776 = vmatpush1.xpose.msra.mxu0 0.0
        %777 = vmatprep.mubr.f32.mxu0 0.0
        %778 = vmatmul.mubr.f32.gmra.mrb[0].mxu0 %v705
        %v779 = vpop.f32.mrb[0].mxu0
        %v780 = vadd.f32 0.0, %v779
        %v781 = vpop.f32.mrb[0].mxu0
        %782 = vdwg.mxu0
        %v784 = vsel %vm323, %v320, 0
        %v787 = vsel %vm323, %v478, 0
        %v790 = vsel %vm323, %v483, 0
        %792 = vmatprep.subr.mxu0 0.0
        %793 = vmatpush1.xpose.msra.mxu0 %v787
        %794 = vmatprep.subr.mxu0 0.0
        %795 = vmatpush1.xpose.msra.mxu0 %v790
        %796 = vmatprep.subr.mxu0 0.0
        %797 = vmatpush1.xpose.msra.mxu0 0.0
        %798 = vmatprep.subr.mxu0 0.0
        %799 = vmatpush1.xpose.msra.mxu0 0.0
        %800 = vmatprep.subr.mxu0 0.0
        %801 = vmatpush1.xpose.msra.mxu0 0.0
        %802 = vmatprep.subr.mxu0 0.0
        %803 = vmatpush1.xpose.msra.mxu0 0.0
        %804 = vmatprep.subr.mxu0 0.0
        %805 = vmatpush1.xpose.msra.mxu0 0.0
        %806 = vmatprep.subr.mxu0 0.0
        %807 = vmatpush1.xpose.msra.mxu0 0.0
        %808 = vmatprep.subr.mxu0 0.0
        %809 = vmatpush1.xpose.msra.mxu0 0.0
        %810 = vmatprep.subr.mxu0 0.0
        %811 = vmatpush1.xpose.msra.mxu0 0.0
        %812 = vmatprep.subr.mxu0 0.0
        %813 = vmatpush1.xpose.msra.mxu0 0.0
        %814 = vmatprep.subr.mxu0 0.0
        %815 = vmatpush1.xpose.msra.mxu0 0.0
        %816 = vmatprep.subr.mxu0 0.0
        %817 = vmatpush1.xpose.msra.mxu0 0.0
        %818 = vmatprep.subr.mxu0 0.0
        %819 = vmatpush1.xpose.msra.mxu0 0.0
        %820 = vmatprep.subr.mxu0 0.0
        %821 = vmatpush1.xpose.msra.mxu0 0.0
        %822 = vmatprep.subr.mxu0 0.0
        %823 = vmatpush1.xpose.msra.mxu0 0.0
        %824 = vmatprep.subr.mxu0 0.0
        %825 = vmatpush1.xpose.msra.mxu0 0.0
        %826 = vmatprep.subr.mxu0 0.0
        %827 = vmatpush1.xpose.msra.mxu0 0.0
        %828 = vmatprep.subr.mxu0 0.0
        %829 = vmatpush1.xpose.msra.mxu0 0.0
        %830 = vmatprep.subr.mxu0 0.0
        %831 = vmatpush1.xpose.msra.mxu0 0.0
        %832 = vmatprep.subr.mxu0 0.0
        %833 = vmatpush1.xpose.msra.mxu0 0.0
        %834 = vmatprep.subr.mxu0 0.0
        %835 = vmatpush1.xpose.msra.mxu0 0.0
        %836 = vmatprep.subr.mxu0 0.0
        %837 = vmatpush1.xpose.msra.mxu0 0.0
        %838 = vmatprep.subr.mxu0 0.0
        %839 = vmatpush1.xpose.msra.mxu0 0.0
        %840 = vmatprep.subr.mxu0 0.0
        %841 = vmatpush1.xpose.msra.mxu0 0.0
        %842 = vmatprep.subr.mxu0 0.0
        %843 = vmatpush1.xpose.msra.mxu0 0.0
        %844 = vmatprep.subr.mxu0 0.0
        %845 = vmatpush1.xpose.msra.mxu0 0.0
        %846 = vmatprep.subr.mxu0 0.0
        %847 = vmatpush1.xpose.msra.mxu0 0.0
        %848 = vmatprep.subr.mxu0 0.0
        %849 = vmatpush1.xpose.msra.mxu0 0.0
        %850 = vmatprep.subr.mxu0 0.0
        %851 = vmatpush1.xpose.msra.mxu0 0.0
        %852 = vmatprep.subr.mxu0 0.0
        %853 = vmatpush1.xpose.msra.mxu0 0.0
        %854 = vmatprep.subr.mxu0 0.0
        %855 = vmatpush1.xpose.msra.mxu0 0.0
        %856 = vmatprep.mubr.f32.mxu0 0.0
        %857 = vmatmul.mubr.f32.gmra.mrb[0].mxu0 %v784
        %v858 = vpop.f32.mrb[0].mxu0
        %v859 = vadd.f32 0.0, %v858
        %v860 = vpop.f32.mrb[0].mxu0
        %861 = vdwg.mxu0
        %v863 = vsel %vm323, %v321, 0
        %v866 = vsel %vm323, %v559, 0
        %v869 = vsel %vm323, %v564, 0
        %871 = vmatprep.subr.mxu0 0.0
        %872 = vmatpush1.xpose.msra.mxu0 %v866
        %873 = vmatprep.subr.mxu0 0.0
        %874 = vmatpush1.xpose.msra.mxu0 %v869
        %875 = vmatprep.subr.mxu0 0.0
        %876 = vmatpush1.xpose.msra.mxu0 0.0
        %877 = vmatprep.subr.mxu0 0.0
        %878 = vmatpush1.xpose.msra.mxu0 0.0
        %879 = vmatprep.subr.mxu0 0.0
        %880 = vmatpush1.xpose.msra.mxu0 0.0
        %881 = vmatprep.subr.mxu0 0.0
        %882 = vmatpush1.xpose.msra.mxu0 0.0
        %883 = vmatprep.subr.mxu0 0.0
        %884 = vmatpush1.xpose.msra.mxu0 0.0
        %885 = vmatprep.subr.mxu0 0.0
        %886 = vmatpush1.xpose.msra.mxu0 0.0
        %887 = vmatprep.subr.mxu0 0.0
        %888 = vmatpush1.xpose.msra.mxu0 0.0
        %889 = vmatprep.subr.mxu0 0.0
        %890 = vmatpush1.xpose.msra.mxu0 0.0
        %891 = vmatprep.subr.mxu0 0.0
        %892 = vmatpush1.xpose.msra.mxu0 0.0
        %893 = vmatprep.subr.mxu0 0.0
        %894 = vmatpush1.xpose.msra.mxu0 0.0
        %895 = vmatprep.subr.mxu0 0.0
        %896 = vmatpush1.xpose.msra.mxu0 0.0
        %897 = vmatprep.subr.mxu0 0.0
        %898 = vmatpush1.xpose.msra.mxu0 0.0
        %899 = vmatprep.subr.mxu0 0.0
        %900 = vmatpush1.xpose.msra.mxu0 0.0
        %901 = vmatprep.subr.mxu0 0.0
        %902 = vmatpush1.xpose.msra.mxu0 0.0
        %903 = vmatprep.subr.mxu0 0.0
        %904 = vmatpush1.xpose.msra.mxu0 0.0
        %905 = vmatprep.subr.mxu0 0.0
        %906 = vmatpush1.xpose.msra.mxu0 0.0
        %907 = vmatprep.subr.mxu0 0.0
        %908 = vmatpush1.xpose.msra.mxu0 0.0
        %909 = vmatprep.subr.mxu0 0.0
        %910 = vmatpush1.xpose.msra.mxu0 0.0
        %911 = vmatprep.subr.mxu0 0.0
        %912 = vmatpush1.xpose.msra.mxu0 0.0
        %913 = vmatprep.subr.mxu0 0.0
        %914 = vmatpush1.xpose.msra.mxu0 0.0
        %915 = vmatprep.subr.mxu0 0.0
        %916 = vmatpush1.xpose.msra.mxu0 0.0
        %917 = vmatprep.subr.mxu0 0.0
        %918 = vmatpush1.xpose.msra.mxu0 0.0
        %919 = vmatprep.subr.mxu0 0.0
        %920 = vmatpush1.xpose.msra.mxu0 0.0
        %921 = vmatprep.subr.mxu0 0.0
        %922 = vmatpush1.xpose.msra.mxu0 0.0
        %923 = vmatprep.subr.mxu0 0.0
        %924 = vmatpush1.xpose.msra.mxu0 0.0
        %925 = vmatprep.subr.mxu0 0.0
        %926 = vmatpush1.xpose.msra.mxu0 0.0
        %927 = vmatprep.subr.mxu0 0.0
        %928 = vmatpush1.xpose.msra.mxu0 0.0
        %929 = vmatprep.subr.mxu0 0.0
        %930 = vmatpush1.xpose.msra.mxu0 0.0
        %931 = vmatprep.subr.mxu0 0.0
        %932 = vmatpush1.xpose.msra.mxu0 0.0
        %933 = vmatprep.subr.mxu0 0.0
        %934 = vmatpush1.xpose.msra.mxu0 0.0
        %935 = vmatprep.mubr.f32.mxu0 0.0
        %936 = vmatmul.mubr.f32.gmra.mrb[0].mxu0 %v863
        %v937 = vpop.f32.mrb[0].mxu0
        %v938 = vadd.f32 0.0, %v937
        %v939 = vpop.f32.mrb[0].mxu0
        %940 = vdwg.mxu0
        %v942 = vsel %vm323, %v322, 0
        %v945 = vsel %vm323, %v640, 0
        %v948 = vsel %vm323, %v645, 0
        %950 = vmatprep.subr.mxu0 0.0
        %951 = vmatpush1.xpose.msra.mxu0 %v945
        %952 = vmatprep.subr.mxu0 0.0
        %953 = vmatpush1.xpose.msra.mxu0 %v948
        %954 = vmatprep.subr.mxu0 0.0
        %955 = vmatpush1.xpose.msra.mxu0 0.0
        %956 = vmatprep.subr.mxu0 0.0
        %957 = vmatpush1.xpose.msra.mxu0 0.0
        %958 = vmatprep.subr.mxu0 0.0
        %959 = vmatpush1.xpose.msra.mxu0 0.0
        %960 = vmatprep.subr.mxu0 0.0
        %961 = vmatpush1.xpose.msra.mxu0 0.0
        %962 = vmatprep.subr.mxu0 0.0
        %963 = vmatpush1.xpose.msra.mxu0 0.0
        %964 = vmatprep.subr.mxu0 0.0
        %965 = vmatpush1.xpose.msra.mxu0 0.0
        %966 = vmatprep.subr.mxu0 0.0
        %967 = vmatpush1.xpose.msra.mxu0 0.0
        %968 = vmatprep.subr.mxu0 0.0
        %969 = vmatpush1.xpose.msra.mxu0 0.0
        %970 = vmatprep.subr.mxu0 0.0
        %971 = vmatpush1.xpose.msra.mxu0 0.0
        %972 = vmatprep.subr.mxu0 0.0
        %973 = vmatpush1.xpose.msra.mxu0 0.0
        %974 = vmatprep.subr.mxu0 0.0
        %975 = vmatpush1.xpose.msra.mxu0 0.0
        %976 = vmatprep.subr.mxu0 0.0
        %977 = vmatpush1.xpose.msra.mxu0 0.0
        %978 = vmatprep.subr.mxu0 0.0
        %979 = vmatpush1.xpose.msra.mxu0 0.0
        %980 = vmatprep.subr.mxu0 0.0
        %981 = vmatpush1.xpose.msra.mxu0 0.0
        %982 = vmatprep.subr.mxu0 0.0
        %983 = vmatpush1.xpose.msra.mxu0 0.0
        %984 = vmatprep.subr.mxu0 0.0
        %985 = vmatpush1.xpose.msra.mxu0 0.0
        %986 = vmatprep.subr.mxu0 0.0
        %987 = vmatpush1.xpose.msra.mxu0 0.0
        %988 = vmatprep.subr.mxu0 0.0
        %989 = vmatpush1.xpose.msra.mxu0 0.0
        %990 = vmatprep.subr.mxu0 0.0
        %991 = vmatpush1.xpose.msra.mxu0 0.0
        %992 = vmatprep.subr.mxu0 0.0
        %993 = vmatpush1.xpose.msra.mxu0 0.0
        %994 = vmatprep.subr.mxu0 0.0
        %995 = vmatpush1.xpose.msra.mxu0 0.0
        %996 = vmatprep.subr.mxu0 0.0
        %997 = vmatpush1.xpose.msra.mxu0 0.0
        %998 = vmatprep.subr.mxu0 0.0
        %999 = vmatpush1.xpose.msra.mxu0 0.0
        %1000 = vmatprep.subr.mxu0 0.0
        %1001 = vmatpush1.xpose.msra.mxu0 0.0
        %1002 = vmatprep.subr.mxu0 0.0
        %1003 = vmatpush1.xpose.msra.mxu0 0.0
        %1004 = vmatprep.subr.mxu0 0.0
        %1005 = vmatpush1.xpose.msra.mxu0 0.0
        %1006 = vmatprep.subr.mxu0 0.0
        %1007 = vmatpush1.xpose.msra.mxu0 0.0
        %1008 = vmatprep.subr.mxu0 0.0
        %1009 = vmatpush1.xpose.msra.mxu0 0.0
        %1010 = vmatprep.subr.mxu0 0.0
        %1011 = vmatpush1.xpose.msra.mxu0 0.0
        %1012 = vmatprep.subr.mxu0 0.0
        %1013 = vmatpush1.xpose.msra.mxu0 0.0
        %1014 = vmatprep.mubr.f32.mxu0 0.0
        %1015 = vmatmul.mubr.f32.gmra.mrb[0].mxu0 %v942
        %v1016 = vpop.f32.mrb[0].mxu0
        %v1017 = vadd.f32 0.0, %v1016
        %v1018 = vpop.f32.mrb[0].mxu0
        %1019 = vdwg.mxu0
        %v1020 = vlaneseq
        %v1021 = vshrl.u32 %v1020, 7
        %v1022 = vsub.s32 0, %v1021
        %v1023 = vrot.slane %v780, %v1022
        %v1024 = vlaneseq
        %v1025 = vshrl.u32 %v1024, 7
        %v1026 = vsub.s32 0, %v1025
        %v1027 = vrot.slane %v859, %v1026
        %v1028 = vlaneseq
        %v1029 = vshrl.u32 %v1028, 7
        %v1030 = vsub.s32 0, %v1029
        %v1031 = vrot.slane %v938, %v1030
        %v1032 = vlaneseq
        %v1033 = vshrl.u32 %v1032, 7
        %v1034 = vsub.s32 0, %v1033
        %v1035 = vrot.slane %v1017, %v1034
        %v1036 = vadd.f32 %v682, %v1023
        %v1037 = vadd.f32 %v685, %v1023
        %v1038 = vadd.f32 %v688, %v1027
        %v1039 = vadd.f32 %v691, %v1027
        %v1040 = vadd.f32 %v694, %v1031
        %v1041 = vadd.f32 %v697, %v1031
        %v1042 = vadd.f32 %v700, %v1035
        %v1043 = vadd.f32 %v703, %v1035
        %vm1044 = vcmp.gt.f32.partialorder %v1036, 0.0
        %vm1045 = vcmp.gt.f32.partialorder %v1037, 0.0
        %vm1046 = vcmp.gt.f32.partialorder %v1038, 0.0
        %vm1047 = vcmp.gt.f32.partialorder %v1039, 0.0
        %vm1048 = vcmp.gt.f32.partialorder %v1040, 0.0
        %vm1049 = vcmp.gt.f32.partialorder %v1041, 0.0
        %vm1050 = vcmp.gt.f32.partialorder %v1042, 0.0
        %vm1051 = vcmp.gt.f32.partialorder %v1043, 0.0
        %v1052 = vmul.f32 %v1036, 0.1
        %v1053 = vmul.f32 %v1037, 0.1
        %v1054 = vmul.f32 %v1038, 0.1
        %v1055 = vmul.f32 %v1039, 0.1
        %v1056 = vmul.f32 %v1040, 0.1
        %v1057 = vmul.f32 %v1041, 0.1
        %v1058 = vmul.f32 %v1042, 0.1
        %v1059 = vmul.f32 %v1043, 0.1
        %v1060 = vsel %vm1044, %v1036, %v1052
        %v1061 = vsel %vm1045, %v1037, %v1053
        %v1062 = vsel %vm1046, %v1038, %v1054
        %v1063 = vsel %vm1047, %v1039, %v1055
        %v1064 = vsel %vm1048, %v1040, %v1056
        %v1065 = vsel %vm1049, %v1041, %v1057
        %v1066 = vsel %vm1050, %v1042, %v1058
        %v1067 = vsel %vm1051, %v1043, %v1059
        %v1068 = vsel %vm297, 1, 0
        %v1069 = vsel %vm298, 1, 0
        %vm1070 = vcmp.eq.s32.totalorder %v1068, 1
        %vm1071 = vcmp.eq.s32.totalorder %v1069, 1
        %v1072 = vsel %vm1070, %v1060, -9e+15
        %v1073 = vsel %vm1071, %v1061, -9e+15
        %v1074 = vsel %vm1070, %v1062, -9e+15
        %v1075 = vsel %vm1071, %v1063, -9e+15
        %v1076 = vsel %vm1070, %v1064, -9e+15
        %v1077 = vsel %vm1071, %v1065, -9e+15
        %v1078 = vsel %vm1070, %v1066, -9e+15
        %v1079 = vsel %vm1071, %v1067, -9e+15
        %v1080 = vmul.f32 %v1072, 2000.0
        %v1081 = vmul.f32 %v1073, 2000.0
        %v1082 = vmul.f32 %v1074, 2000.0
        %v1083 = vmul.f32 %v1075, 2000.0
        %v1084 = vmul.f32 %v1076, 2000.0
        %v1085 = vmul.f32 %v1077, 2000.0
        %v1086 = vmul.f32 %v1078, 2000.0
        %v1087 = vmul.f32 %v1079, 2000.0
        %vm1088 = vcmask 130048
        %v1089 = vsel %vm1088, %v1080, -inf
        %1090 = vmax.xlane.f32.xlu0 %v1089
        %v1091 = vpop.xlane.xlu0 %1090
        %v1092 = vsel %vm1088, %v1081, -inf
        %1093 = vmax.xlane.f32.xlu0 %v1092
        %v1094 = vpop.xlane.xlu0 %1093
        %v1095 = vsel %vm1088, %v1082, -inf
        %1096 = vmax.xlane.f32.xlu0 %v1095
        %v1097 = vpop.xlane.xlu0 %1096
        %v1098 = vsel %vm1088, %v1083, -inf
        %1099 = vmax.xlane.f32.xlu0 %v1098
        %v1100 = vpop.xlane.xlu0 %1099
        %v1101 = vsel %vm1088, %v1084, -inf
        %1102 = vmax.xlane.f32.xlu0 %v1101
        %v1103 = vpop.xlane.xlu0 %1102
        %v1104 = vsel %vm1088, %v1085, -inf
        %1105 = vmax.xlane.f32.xlu0 %v1104
        %v1106 = vpop.xlane.xlu0 %1105
        %v1107 = vsel %vm1088, %v1086, -inf
        %1108 = vmax.xlane.f32.xlu0 %v1107
        %v1109 = vpop.xlane.xlu0 %1108
        %v1110 = vsel %vm1088, %v1087, -inf
        %1111 = vmax.xlane.f32.xlu0 %v1110
        %v1112 = vpop.xlane.xlu0 %1111
        %v1113 = vsub.f32 %v1080, %v1091
        %v1114 = vsub.f32 %v1081, %v1094
        %v1115 = vsub.f32 %v1082, %v1097
        %v1116 = vsub.f32 %v1083, %v1100
        %v1117 = vsub.f32 %v1084, %v1103
        %v1118 = vsub.f32 %v1085, %v1106
        %v1119 = vsub.f32 %v1086, %v1109
        %v1120 = vsub.f32 %v1087, %v1112
        %v1121 = vmul.f32 %v1113, 1.442695
        %v1122 = vpow.pop %v1121
        %v1123 = vmul.f32 %v1114, 1.442695
        %v1124 = vpow.pop %v1123
        %v1125 = vmul.f32 %v1115, 1.442695
        %v1126 = vpow.pop %v1125
        %v1127 = vmul.f32 %v1116, 1.442695
        %v1128 = vpow.pop %v1127
        %v1129 = vmul.f32 %v1117, 1.442695
        %v1130 = vpow.pop %v1129
        %v1131 = vmul.f32 %v1118, 1.442695
        %v1132 = vpow.pop %v1131
        %v1133 = vmul.f32 %v1119, 1.442695
        %v1134 = vpow.pop %v1133
        %v1135 = vmul.f32 %v1120, 1.442695
        %v1136 = vpow.pop %v1135
        %v1137 = vsel %vm1088, %v1122, 0.0
        %1138 = vadd.xlane.f32.xlu0 %v1137
        %v1139 = vpop.xlane.xlu0 %1138
        %v1140 = vsel %vm1088, %v1124, 0.0
        %1141 = vadd.xlane.f32.xlu0 %v1140
        %v1142 = vpop.xlane.xlu0 %1141
        %v1143 = vsel %vm1088, %v1126, 0.0
        %1144 = vadd.xlane.f32.xlu0 %v1143
        %v1145 = vpop.xlane.xlu0 %1144
        %v1146 = vsel %vm1088, %v1128, 0.0
        %1147 = vadd.xlane.f32.xlu0 %v1146
        %v1148 = vpop.xlane.xlu0 %1147
        %v1149 = vsel %vm1088, %v1130, 0.0
        %1150 = vadd.xlane.f32.xlu0 %v1149
        %v1151 = vpop.xlane.xlu0 %1150
        %v1152 = vsel %vm1088, %v1132, 0.0
        %1153 = vadd.xlane.f32.xlu0 %v1152
        %v1154 = vpop.xlane.xlu0 %1153
        %v1155 = vsel %vm1088, %v1134, 0.0
        %1156 = vadd.xlane.f32.xlu0 %v1155
        %v1157 = vpop.xlane.xlu0 %1156
        %v1158 = vsel %vm1088, %v1136, 0.0
        %1159 = vadd.xlane.f32.xlu0 %v1158
        %v1160 = vpop.xlane.xlu0 %1159
        %v1161 = vrcp.pop %v1139
        %v1162 = vmul.f32 %v1122, %v1161
        %v1163 = vrcp.pop %v1142
        %v1164 = vmul.f32 %v1124, %v1163
        %v1165 = vrcp.pop %v1145
        %v1166 = vmul.f32 %v1126, %v1165
        %v1167 = vrcp.pop %v1148
        %v1168 = vmul.f32 %v1128, %v1167
        %v1169 = vrcp.pop %v1151
        %v1170 = vmul.f32 %v1130, %v1169
        %v1171 = vrcp.pop %v1154
        %v1172 = vmul.f32 %v1132, %v1171
        %v1173 = vrcp.pop %v1157
        %v1174 = vmul.f32 %v1134, %v1173
        %v1175 = vrcp.pop %v1160
        %v1176 = vmul.f32 %v1136, %v1175
        %v1178 = vsel %vm1088, %v1162, 0
        %v1181 = vsel %vm1088, %v1164, 0
        %1183 = vmatprep.subr.mxu0 0.0
        %1184 = vmatpush1.msra.mxu0 %v397
        %1185 = vmatprep.subr.mxu0 0.0
        %1186 = vmatpush1.msra.mxu0 %v402
        %1187 = vmatprep.subr.mxu0 0.0
        %1188 = vmatpush1.msra.mxu0 0.0
        %1189 = vmatprep.subr.mxu0 0.0
        %1190 = vmatpush1.msra.mxu0 0.0
        %1191 = vmatprep.subr.mxu0 0.0
        %1192 = vmatpush1.msra.mxu0 0.0
        %1193 = vmatprep.subr.mxu0 0.0
        %1194 = vmatpush1.msra.mxu0 0.0
        %1195 = vmatprep.subr.mxu0 0.0
        %1196 = vmatpush1.msra.mxu0 0.0
        %1197 = vmatprep.subr.mxu0 0.0
        %1198 = vmatpush1.msra.mxu0 0.0
        %1199 = vmatprep.subr.mxu0 0.0
        %1200 = vmatpush1.msra.mxu0 0.0
        %1201 = vmatprep.subr.mxu0 0.0
        %1202 = vmatpush1.msra.mxu0 0.0
        %1203 = vmatprep.subr.mxu0 0.0
        %1204 = vmatpush1.msra.mxu0 0.0
        %1205 = vmatprep.subr.mxu0 0.0
        %1206 = vmatpush1.msra.mxu0 0.0
        %1207 = vmatprep.subr.mxu0 0.0
        %1208 = vmatpush1.msra.mxu0 0.0
        %1209 = vmatprep.subr.mxu0 0.0
        %1210 = vmatpush1.msra.mxu0 0.0
        %1211 = vmatprep.subr.mxu0 0.0
        %1212 = vmatpush1.msra.mxu0 0.0
        %1213 = vmatprep.subr.mxu0 0.0
        %1214 = vmatpush1.msra.mxu0 0.0
        %1215 = vmatprep.subr.mxu0 0.0
        %1216 = vmatpush1.msra.mxu0 0.0
        %1217 = vmatprep.subr.mxu0 0.0
        %1218 = vmatpush1.msra.mxu0 0.0
        %1219 = vmatprep.subr.mxu0 0.0
        %1220 = vmatpush1.msra.mxu0 0.0
        %1221 = vmatprep.subr.mxu0 0.0
        %1222 = vmatpush1.msra.mxu0 0.0
        %1223 = vmatprep.subr.mxu0 0.0
        %1224 = vmatpush1.msra.mxu0 0.0
        %1225 = vmatprep.subr.mxu0 0.0
        %1226 = vmatpush1.msra.mxu0 0.0
        %1227 = vmatprep.subr.mxu0 0.0
        %1228 = vmatpush1.msra.mxu0 0.0
        %1229 = vmatprep.subr.mxu0 0.0
        %1230 = vmatpush1.msra.mxu0 0.0
        %1231 = vmatprep.subr.mxu0 0.0
        %1232 = vmatpush1.msra.mxu0 0.0
        %1233 = vmatprep.subr.mxu0 0.0
        %1234 = vmatpush1.msra.mxu0 0.0
        %1235 = vmatprep.subr.mxu0 0.0
        %1236 = vmatpush1.msra.mxu0 0.0
        %1237 = vmatprep.subr.mxu0 0.0
        %1238 = vmatpush1.msra.mxu0 0.0
        %1239 = vmatprep.subr.mxu0 0.0
        %1240 = vmatpush1.msra.mxu0 0.0
        %1241 = vmatprep.subr.mxu0 0.0
        %1242 = vmatpush1.msra.mxu0 0.0
        %1243 = vmatprep.subr.mxu0 0.0
        %1244 = vmatpush1.msra.mxu0 0.0
        %1245 = vmatprep.subr.mxu0 0.0
        %1246 = vmatpush1.msra.mxu0 0.0
        %1247 = vmatprep.mubr.f32.mxu0 0.0
        %1248 = vmatmul.mubr.f32.gmra.mrb[0].mxu0 %v1178
        %v1249 = vpop.f32.mrb[0].mxu0
        %v1250 = vadd.f32 0.0, %v1249
        %v1251 = vpop.f32.mrb[0].mxu0
        %1252 = vmatprep.mubr.f32.mxu0 0.0
        %1253 = vmatmul.mubr.f32.gmra.mrb[0].mxu0 %v1181
        %v1254 = vpop.f32.mrb[0].mxu0
        %v1255 = vadd.f32 0.0, %v1254
        %v1256 = vpop.f32.mrb[0].mxu0
        %1257 = vdwg.mxu0
        %v1259 = vsel %vm1088, %v1166, 0
        %v1262 = vsel %vm1088, %v1168, 0
        %1264 = vmatprep.subr.mxu0 0.0
        %1265 = vmatpush1.msra.mxu0 %v478
        %1266 = vmatprep.subr.mxu0 0.0
        %1267 = vmatpush1.msra.mxu0 %v483
        %1268 = vmatprep.subr.mxu0 0.0
        %1269 = vmatpush1.msra.mxu0 0.0
        %1270 = vmatprep.subr.mxu0 0.0
        %1271 = vmatpush1.msra.mxu0 0.0
        %1272 = vmatprep.subr.mxu0 0.0
        %1273 = vmatpush1.msra.mxu0 0.0
        %1274 = vmatprep.subr.mxu0 0.0
        %1275 = vmatpush1.msra.mxu0 0.0
        %1276 = vmatprep.subr.mxu0 0.0
        %1277 = vmatpush1.msra.mxu0 0.0
        %1278 = vmatprep.subr.mxu0 0.0
        %1279 = vmatpush1.msra.mxu0 0.0
        %1280 = vmatprep.subr.mxu0 0.0
        %1281 = vmatpush1.msra.mxu0 0.0
        %1282 = vmatprep.subr.mxu0 0.0
        %1283 = vmatpush1.msra.mxu0 0.0
        %1284 = vmatprep.subr.mxu0 0.0
        %1285 = vmatpush1.msra.mxu0 0.0
        %1286 = vmatprep.subr.mxu0 0.0
        %1287 = vmatpush1.msra.mxu0 0.0
        %1288 = vmatprep.subr.mxu0 0.0
        %1289 = vmatpush1.msra.mxu0 0.0
        %1290 = vmatprep.subr.mxu0 0.0
        %1291 = vmatpush1.msra.mxu0 0.0
        %1292 = vmatprep.subr.mxu0 0.0
        %1293 = vmatpush1.msra.mxu0 0.0
        %1294 = vmatprep.subr.mxu0 0.0
        %1295 = vmatpush1.msra.mxu0 0.0
        %1296 = vmatprep.subr.mxu0 0.0
        %1297 = vmatpush1.msra.mxu0 0.0
        %1298 = vmatprep.subr.mxu0 0.0
        %1299 = vmatpush1.msra.mxu0 0.0
        %1300 = vmatprep.subr.mxu0 0.0
        %1301 = vmatpush1.msra.mxu0 0.0
        %1302 = vmatprep.subr.mxu0 0.0
        %1303 = vmatpush1.msra.mxu0 0.0
        %1304 = vmatprep.subr.mxu0 0.0
        %1305 = vmatpush1.msra.mxu0 0.0
        %1306 = vmatprep.subr.mxu0 0.0
        %1307 = vmatpush1.msra.mxu0 0.0
        %1308 = vmatprep.subr.mxu0 0.0
        %1309 = vmatpush1.msra.mxu0 0.0
        %1310 = vmatprep.subr.mxu0 0.0
        %1311 = vmatpush1.msra.mxu0 0.0
        %1312 = vmatprep.subr.mxu0 0.0
        %1313 = vmatpush1.msra.mxu0 0.0
        %1314 = vmatprep.subr.mxu0 0.0
        %1315 = vmatpush1.msra.mxu0 0.0
        %1316 = vmatprep.subr.mxu0 0.0
        %1317 = vmatpush1.msra.mxu0 0.0
        %1318 = vmatprep.subr.mxu0 0.0
        %1319 = vmatpush1.msra.mxu0 0.0
        %1320 = vmatprep.subr.mxu0 0.0
        %1321 = vmatpush1.msra.mxu0 0.0
        %1322 = vmatprep.subr.mxu0 0.0
        %1323 = vmatpush1.msra.mxu0 0.0
        %1324 = vmatprep.subr.mxu0 0.0
        %1325 = vmatpush1.msra.mxu0 0.0
        %1326 = vmatprep.subr.mxu0 0.0
        %1327 = vmatpush1.msra.mxu0 0.0
        %1328 = vmatprep.mubr.f32.mxu0 0.0
        %1329 = vmatmul.mubr.f32.gmra.mrb[0].mxu0 %v1259
        %v1330 = vpop.f32.mrb[0].mxu0
        %v1331 = vadd.f32 0.0, %v1330
        %v1332 = vpop.f32.mrb[0].mxu0
        %1333 = vmatprep.mubr.f32.mxu0 0.0
        %1334 = vmatmul.mubr.f32.gmra.mrb[0].mxu0 %v1262
        %v1335 = vpop.f32.mrb[0].mxu0
        %v1336 = vadd.f32 0.0, %v1335
        %v1337 = vpop.f32.mrb[0].mxu0
        %1338 = vdwg.mxu0
        %v1340 = vsel %vm1088, %v1170, 0
        %v1343 = vsel %vm1088, %v1172, 0
        %1345 = vmatprep.subr.mxu0 0.0
        %1346 = vmatpush1.msra.mxu0 %v559
        %1347 = vmatprep.subr.mxu0 0.0
        %1348 = vmatpush1.msra.mxu0 %v564
        %1349 = vmatprep.subr.mxu0 0.0
        %1350 = vmatpush1.msra.mxu0 0.0
        %1351 = vmatprep.subr.mxu0 0.0
        %1352 = vmatpush1.msra.mxu0 0.0
        %1353 = vmatprep.subr.mxu0 0.0
        %1354 = vmatpush1.msra.mxu0 0.0
        %1355 = vmatprep.subr.mxu0 0.0
        %1356 = vmatpush1.msra.mxu0 0.0
        %1357 = vmatprep.subr.mxu0 0.0
        %1358 = vmatpush1.msra.mxu0 0.0
        %1359 = vmatprep.subr.mxu0 0.0
        %1360 = vmatpush1.msra.mxu0 0.0
        %1361 = vmatprep.subr.mxu0 0.0
        %1362 = vmatpush1.msra.mxu0 0.0
        %1363 = vmatprep.subr.mxu0 0.0
        %1364 = vmatpush1.msra.mxu0 0.0
        %1365 = vmatprep.subr.mxu0 0.0
        %1366 = vmatpush1.msra.mxu0 0.0
        %1367 = vmatprep.subr.mxu0 0.0
        %1368 = vmatpush1.msra.mxu0 0.0
        %1369 = vmatprep.subr.mxu0 0.0
        %1370 = vmatpush1.msra.mxu0 0.0
        %1371 = vmatprep.subr.mxu0 0.0
        %1372 = vmatpush1.msra.mxu0 0.0
        %1373 = vmatprep.subr.mxu0 0.0
        %1374 = vmatpush1.msra.mxu0 0.0
        %1375 = vmatprep.subr.mxu0 0.0
        %1376 = vmatpush1.msra.mxu0 0.0
        %1377 = vmatprep.subr.mxu0 0.0
        %1378 = vmatpush1.msra.mxu0 0.0
        %1379 = vmatprep.subr.mxu0 0.0
        %1380 = vmatpush1.msra.mxu0 0.0
        %1381 = vmatprep.subr.mxu0 0.0
        %1382 = vmatpush1.msra.mxu0 0.0
        %1383 = vmatprep.subr.mxu0 0.0
        %1384 = vmatpush1.msra.mxu0 0.0
        %1385 = vmatprep.subr.mxu0 0.0
        %1386 = vmatpush1.msra.mxu0 0.0
        %1387 = vmatprep.subr.mxu0 0.0
        %1388 = vmatpush1.msra.mxu0 0.0
        %1389 = vmatprep.subr.mxu0 0.0
        %1390 = vmatpush1.msra.mxu0 0.0
        %1391 = vmatprep.subr.mxu0 0.0
        %1392 = vmatpush1.msra.mxu0 0.0
        %1393 = vmatprep.subr.mxu0 0.0
        %1394 = vmatpush1.msra.mxu0 0.0
        %1395 = vmatprep.subr.mxu0 0.0
        %1396 = vmatpush1.msra.mxu0 0.0
        %1397 = vmatprep.subr.mxu0 0.0
        %1398 = vmatpush1.msra.mxu0 0.0
        %1399 = vmatprep.subr.mxu0 0.0
        %1400 = vmatpush1.msra.mxu0 0.0
        %1401 = vmatprep.subr.mxu0 0.0
        %1402 = vmatpush1.msra.mxu0 0.0
        %1403 = vmatprep.subr.mxu0 0.0
        %1404 = vmatpush1.msra.mxu0 0.0
        %1405 = vmatprep.subr.mxu0 0.0
        %1406 = vmatpush1.msra.mxu0 0.0
        %1407 = vmatprep.subr.mxu0 0.0
        %1408 = vmatpush1.msra.mxu0 0.0
        %1409 = vmatprep.mubr.f32.mxu0 0.0
        %1410 = vmatmul.mubr.f32.gmra.mrb[0].mxu0 %v1340
        %v1411 = vpop.f32.mrb[0].mxu0
        %v1412 = vadd.f32 0.0, %v1411
        %v1413 = vpop.f32.mrb[0].mxu0
        %1414 = vmatprep.mubr.f32.mxu0 0.0
        %1415 = vmatmul.mubr.f32.gmra.mrb[0].mxu0 %v1343
        %v1416 = vpop.f32.mrb[0].mxu0
        %v1417 = vadd.f32 0.0, %v1416
        %v1418 = vpop.f32.mrb[0].mxu0
        %1419 = vdwg.mxu0
        %v1421 = vsel %vm1088, %v1174, 0
        %v1424 = vsel %vm1088, %v1176, 0
        %1426 = vmatprep.subr.mxu0 0.0
        %1427 = vmatpush1.msra.mxu0 %v640
        %1428 = vmatprep.subr.mxu0 0.0
        %1429 = vmatpush1.msra.mxu0 %v645
        %1430 = vmatprep.subr.mxu0 0.0
        %1431 = vmatpush1.msra.mxu0 0.0
        %1432 = vmatprep.subr.mxu0 0.0
        %1433 = vmatpush1.msra.mxu0 0.0
        %1434 = vmatprep.subr.mxu0 0.0
        %1435 = vmatpush1.msra.mxu0 0.0
        %1436 = vmatprep.subr.mxu0 0.0
        %1437 = vmatpush1.msra.mxu0 0.0
        %1438 = vmatprep.subr.mxu0 0.0
        %1439 = vmatpush1.msra.mxu0 0.0
        %1440 = vmatprep.subr.mxu0 0.0
        %1441 = vmatpush1.msra.mxu0 0.0
        %1442 = vmatprep.subr.mxu0 0.0
        %1443 = vmatpush1.msra.mxu0 0.0
        %1444 = vmatprep.subr.mxu0 0.0
        %1445 = vmatpush1.msra.mxu0 0.0
        %1446 = vmatprep.subr.mxu0 0.0
        %1447 = vmatpush1.msra.mxu0 0.0
        %1448 = vmatprep.subr.mxu0 0.0
        %1449 = vmatpush1.msra.mxu0 0.0
        %1450 = vmatprep.subr.mxu0 0.0
        %1451 = vmatpush1.msra.mxu0 0.0
        %1452 = vmatprep.subr.mxu0 0.0
        %1453 = vmatpush1.msra.mxu0 0.0
        %1454 = vmatprep.subr.mxu0 0.0
        %1455 = vmatpush1.msra.mxu0 0.0
        %1456 = vmatprep.subr.mxu0 0.0
        %1457 = vmatpush1.msra.mxu0 0.0
        %1458 = vmatprep.subr.mxu0 0.0
        %1459 = vmatpush1.msra.mxu0 0.0
        %1460 = vmatprep.subr.mxu0 0.0
        %1461 = vmatpush1.msra.mxu0 0.0
        %1462 = vmatprep.subr.mxu0 0.0
        %1463 = vmatpush1.msra.mxu0 0.0
        %1464 = vmatprep.subr.mxu0 0.0
        %1465 = vmatpush1.msra.mxu0 0.0
        %1466 = vmatprep.subr.mxu0 0.0
        %1467 = vmatpush1.msra.mxu0 0.0
        %1468 = vmatprep.subr.mxu0 0.0
        %1469 = vmatpush1.msra.mxu0 0.0
        %1470 = vmatprep.subr.mxu0 0.0
        %1471 = vmatpush1.msra.mxu0 0.0
        %1472 = vmatprep.subr.mxu0 0.0
        %1473 = vmatpush1.msra.mxu0 0.0
        %1474 = vmatprep.subr.mxu0 0.0
        %1475 = vmatpush1.msra.mxu0 0.0
        %1476 = vmatprep.subr.mxu0 0.0
        %1477 = vmatpush1.msra.mxu0 0.0
        %1478 = vmatprep.subr.mxu0 0.0
        %1479 = vmatpush1.msra.mxu0 0.0
        %1480 = vmatprep.subr.mxu0 0.0
        %1481 = vmatpush1.msra.mxu0 0.0
        %1482 = vmatprep.subr.mxu0 0.0
        %1483 = vmatpush1.msra.mxu0 0.0
        %1484 = vmatprep.subr.mxu0 0.0
        %1485 = vmatpush1.msra.mxu0 0.0
        %1486 = vmatprep.subr.mxu0 0.0
        %1487 = vmatpush1.msra.mxu0 0.0
        %1488 = vmatprep.subr.mxu0 0.0
        %1489 = vmatpush1.msra.mxu0 0.0
        %1490 = vmatprep.mubr.f32.mxu0 0.0
        %1491 = vmatmul.mubr.f32.gmra.mrb[0].mxu0 %v1421
        %v1492 = vpop.f32.mrb[0].mxu0
        %v1493 = vadd.f32 0.0, %v1492
        %v1494 = vpop.f32.mrb[0].mxu0
        %1495 = vmatprep.mubr.f32.mxu0 0.0
        %1496 = vmatmul.mubr.f32.gmra.mrb[0].mxu0 %v1424
        %v1497 = vpop.f32.mrb[0].mxu0
        %v1498 = vadd.f32 0.0, %v1497
        %v1499 = vpop.f32.mrb[0].mxu0
        %1500 = vdwg.mxu0
        %vm1501 = vcmp.gt.f32.partialorder %v1250, 0.0
        %vm1502 = vcmp.gt.f32.partialorder %v1255, 0.0
        %vm1503 = vcmp.gt.f32.partialorder %v1331, 0.0
        %vm1504 = vcmp.gt.f32.partialorder %v1336, 0.0
        %vm1505 = vcmp.gt.f32.partialorder %v1412, 0.0
        %vm1506 = vcmp.gt.f32.partialorder %v1417, 0.0
        %vm1507 = vcmp.gt.f32.partialorder %v1493, 0.0
        %vm1508 = vcmp.gt.f32.partialorder %v1498, 0.0
        %v1509 = vmin.f32 %v1250, 0.0
        %v1510 = vmin.f32 %v1255, 0.0
        %v1511 = vmin.f32 %v1331, 0.0
        %v1512 = vmin.f32 %v1336, 0.0
        %v1513 = vmin.f32 %v1412, 0.0
        %v1514 = vmin.f32 %v1417, 0.0
        %v1515 = vmin.f32 %v1493, 0.0
        %v1516 = vmin.f32 %v1498, 0.0
        %v1517 = vmul.f32 %v1509, 1.442695
        %v1518 = vpow.pop %v1517
        %v1519 = vmul.f32 %v1510, 1.442695
        %v1520 = vpow.pop %v1519
        %v1521 = vmul.f32 %v1511, 1.442695
        %v1522 = vpow.pop %v1521
        %v1523 = vmul.f32 %v1512, 1.442695
        %v1524 = vpow.pop %v1523
        %v1525 = vmul.f32 %v1513, 1.442695
        %v1526 = vpow.pop %v1525
        %v1527 = vmul.f32 %v1514, 1.442695
        %v1528 = vpow.pop %v1527
        %v1529 = vmul.f32 %v1515, 1.442695
        %v1530 = vpow.pop %v1529
        %v1531 = vmul.f32 %v1516, 1.442695
        %v1532 = vpow.pop %v1531
        %v1533 = vsub.f32 %v1518, 1.0
        %v1534 = vsub.f32 %v1520, 1.0
        %v1535 = vsub.f32 %v1522, 1.0
        %v1536 = vsub.f32 %v1524, 1.0
        %v1537 = vsub.f32 %v1526, 1.0
        %v1538 = vsub.f32 %v1528, 1.0
        %v1539 = vsub.f32 %v1530, 1.0
        %v1540 = vsub.f32 %v1532, 1.0
        %v1541 = vsel %vm1501, %v1250, %v1533
        %v1542 = vsel %vm1502, %v1255, %v1534
        %v1543 = vsel %vm1503, %v1331, %v1535
        %v1544 = vsel %vm1504, %v1336, %v1536
        %v1545 = vsel %vm1505, %v1412, %v1537
        %v1546 = vsel %vm1506, %v1417, %v1538
        %v1547 = vsel %vm1507, %v1493, %v1539
        %v1548 = vsel %vm1508, %v1498, %v1540
        %1549 = vst.msk [vmem:[%s286] sm:$0xff] %vm323, %v1541
        %1550 = vst.msk [vmem:[%s286 + $0x8] sm:$0xff] %vm323, %v1542
        %1551 = vst.msk [vmem:[%s286 + $0x10] sm:$0xff] %vm323, %v1543
        %1552 = vst.msk [vmem:[%s286 + $0x18] sm:$0xff] %vm323, %v1544
        %1553 = vst.msk [vmem:[%s286 + $0x20] sm:$0xff] %vm323, %v1545
        %1554 = vst.msk [vmem:[%s286 + $0x28] sm:$0xff] %vm323, %v1546
        %1555 = vst.msk [vmem:[%s286 + $0x30] sm:$0xff] %vm323, %v1547
        %1556 = vst.msk [vmem:[%s286 + $0x38] sm:$0xff] %vm323, %v1548
        %s1557 = scalar_lea.vmem [#allocation7], 128
        %v1558 = vld [vmem:[%s1557] sm:$0xff]
        %v1559 = vld [vmem:[%s1557 + $0x8] sm:$0xff]
        %v1560 = vld [vmem:[%s1557 + $0x10] sm:$0xff]
        %v1561 = vld [vmem:[%s1557 + $0x18] sm:$0xff]
        %v1562 = vld [vmem:[%s1557 + $0x20] sm:$0xff]
        %v1563 = vld [vmem:[%s1557 + $0x28] sm:$0xff]
        %v1564 = vld [vmem:[%s1557 + $0x30] sm:$0xff]
        %v1565 = vld [vmem:[%s1557 + $0x38] sm:$0xff]
        %v1566 = vld [vmem:[%s1557 + $0x40] sm:$0xff]
        %v1567 = vld [vmem:[%s1557 + $0x48] sm:$0xff]
        %v1568 = vld [vmem:[%s1557 + $0x50] sm:$0xff]
        %v1569 = vld [vmem:[%s1557 + $0x58] sm:$0xff]
        %v1570 = vld [vmem:[%s1557 + $0x60] sm:$0xff]
        %v1571 = vld [vmem:[%s1557 + $0x68] sm:$0xff]
        %v1572 = vld [vmem:[%s1557 + $0x70] sm:$0xff]
        %v1573 = vld [vmem:[%s1557 + $0x78] sm:$0xff]
        %s1574 = scalar_lea.vmem %s3, 4
        %v1575 = vld [vmem:[%s1574] sm:$0x1]
        %v1576 = vld [vmem:[%s1574 + $0x1] sm:$0x1]
        %v1577 = vld [vmem:[%s1574 + $0x2] sm:$0x1]
        %v1578 = vld [vmem:[%s1574 + $0x3] sm:$0x1]
        %s1579 = scalar_lea.vmem [#allocation8], 4
        %v1580 = vld [vmem:[%s1579] sm:$0x1]
        %v1581 = vld [vmem:[%s1579 + $0x1] sm:$0x1]
        %v1582 = vld [vmem:[%s1579 + $0x2] sm:$0x1]
        %v1583 = vld [vmem:[%s1579 + $0x3] sm:$0x1]
        %v1585 = vsel %vm323, %v1541, 0
        %v1588 = vsel %vm323, %v1542, 0
        %1590 = vmatprep.subr.mxu0 0.0
        %1591 = vmatpush1.msra.mxu0 %v1558
        %1592 = vmatprep.subr.mxu0 0.0
        %1593 = vmatpush1.msra.mxu0 %v1559
        %1594 = vmatprep.subr.mxu0 0.0
        %1595 = vmatpush1.msra.mxu0 %v1560
        %1596 = vmatprep.subr.mxu0 0.0
        %1597 = vmatpush1.msra.mxu0 %v1561
        %1598 = vmatprep.subr.mxu0 0.0
        %1599 = vmatpush1.msra.mxu0 0.0
        %1600 = vmatprep.subr.mxu0 0.0
        %1601 = vmatpush1.msra.mxu0 0.0
        %1602 = vmatprep.subr.mxu0 0.0
        %1603 = vmatpush1.msra.mxu0 0.0
        %1604 = vmatprep.subr.mxu0 0.0
        %1605 = vmatpush1.msra.mxu0 0.0
        %1606 = vmatprep.subr.mxu0 0.0
        %1607 = vmatpush1.msra.mxu0 0.0
        %1608 = vmatprep.subr.mxu0 0.0
        %1609 = vmatpush1.msra.mxu0 0.0
        %1610 = vmatprep.subr.mxu0 0.0
        %1611 = vmatpush1.msra.mxu0 0.0
        %1612 = vmatprep.subr.mxu0 0.0
        %1613 = vmatpush1.msra.mxu0 0.0
        %1614 = vmatprep.subr.mxu0 0.0
        %1615 = vmatpush1.msra.mxu0 0.0
        %1616 = vmatprep.subr.mxu0 0.0
        %1617 = vmatpush1.msra.mxu0 0.0
        %1618 = vmatprep.subr.mxu0 0.0
        %1619 = vmatpush1.msra.mxu0 0.0
        %1620 = vmatprep.subr.mxu0 0.0
        %1621 = vmatpush1.msra.mxu0 0.0
        %1622 = vmatprep.subr.mxu0 0.0
        %1623 = vmatpush1.msra.mxu0 0.0
        %1624 = vmatprep.subr.mxu0 0.0
        %1625 = vmatpush1.msra.mxu0 0.0
        %1626 = vmatprep.subr.mxu0 0.0
        %1627 = vmatpush1.msra.mxu0 0.0
        %1628 = vmatprep.subr.mxu0 0.0
        %1629 = vmatpush1.msra.mxu0 0.0
        %1630 = vmatprep.subr.mxu0 0.0
        %1631 = vmatpush1.msra.mxu0 0.0
        %1632 = vmatprep.subr.mxu0 0.0
        %1633 = vmatpush1.msra.mxu0 0.0
        %1634 = vmatprep.subr.mxu0 0.0
        %1635 = vmatpush1.msra.mxu0 0.0
        %1636 = vmatprep.subr.mxu0 0.0
        %1637 = vmatpush1.msra.mxu0 0.0
        %1638 = vmatprep.subr.mxu0 0.0
        %1639 = vmatpush1.msra.mxu0 0.0
        %1640 = vmatprep.subr.mxu0 0.0
        %1641 = vmatpush1.msra.mxu0 0.0
        %1642 = vmatprep.subr.mxu0 0.0
        %1643 = vmatpush1.msra.mxu0 0.0
        %1644 = vmatprep.subr.mxu0 0.0
        %1645 = vmatpush1.msra.mxu0 0.0
        %1646 = vmatprep.subr.mxu0 0.0
        %1647 = vmatpush1.msra.mxu0 0.0
        %1648 = vmatprep.subr.mxu0 0.0
        %1649 = vmatpush1.msra.mxu0 0.0
        %1650 = vmatprep.subr.mxu0 0.0
        %1651 = vmatpush1.msra.mxu0 0.0
        %1652 = vmatprep.subr.mxu0 0.0
        %1653 = vmatpush1.msra.mxu0 0.0
        %1654 = vmatprep.mubr.f32.mxu0 0.0
        %1655 = vmatmul.mubr.f32.gmra.mrb[0].mxu0 %v1585
        %v1656 = vpop.f32.mrb[0].mxu0
        %v1657 = vadd.f32 0.0, %v1656
        %v1658 = vpop.f32.mrb[0].mxu0
        %1659 = vmatprep.mubr.f32.mxu0 0.0
        %1660 = vmatmul.mubr.f32.gmra.mrb[0].mxu0 %v1588
        %v1661 = vpop.f32.mrb[0].mxu0
        %v1662 = vadd.f32 0.0, %v1661
        %v1663 = vpop.f32.mrb[0].mxu0
        %1664 = vdwg.mxu0
        %v1666 = vsel %vm323, %v1543, 0
        %v1669 = vsel %vm323, %v1544, 0
        %1671 = vmatprep.subr.mxu0 0.0
        %1672 = vmatpush1.msra.mxu0 %v1562
        %1673 = vmatprep.subr.mxu0 0.0
        %1674 = vmatpush1.msra.mxu0 %v1563
        %1675 = vmatprep.subr.mxu0 0.0
        %1676 = vmatpush1.msra.mxu0 %v1564
        %1677 = vmatprep.subr.mxu0 0.0
        %1678 = vmatpush1.msra.mxu0 %v1565
        %1679 = vmatprep.subr.mxu0 0.0
        %1680 = vmatpush1.msra.mxu0 0.0
        %1681 = vmatprep.subr.mxu0 0.0
        %1682 = vmatpush1.msra.mxu0 0.0
        %1683 = vmatprep.subr.mxu0 0.0
        %1684 = vmatpush1.msra.mxu0 0.0
        %1685 = vmatprep.subr.mxu0 0.0
        %1686 = vmatpush1.msra.mxu0 0.0
        %1687 = vmatprep.subr.mxu0 0.0
        %1688 = vmatpush1.msra.mxu0 0.0
        %1689 = vmatprep.subr.mxu0 0.0
        %1690 = vmatpush1.msra.mxu0 0.0
        %1691 = vmatprep.subr.mxu0 0.0
        %1692 = vmatpush1.msra.mxu0 0.0
        %1693 = vmatprep.subr.mxu0 0.0
        %1694 = vmatpush1.msra.mxu0 0.0
        %1695 = vmatprep.subr.mxu0 0.0
        %1696 = vmatpush1.msra.mxu0 0.0
        %1697 = vmatprep.subr.mxu0 0.0
        %1698 = vmatpush1.msra.mxu0 0.0
        %1699 = vmatprep.subr.mxu0 0.0
        %1700 = vmatpush1.msra.mxu0 0.0
        %1701 = vmatprep.subr.mxu0 0.0
        %1702 = vmatpush1.msra.mxu0 0.0
        %1703 = vmatprep.subr.mxu0 0.0
        %1704 = vmatpush1.msra.mxu0 0.0
        %1705 = vmatprep.subr.mxu0 0.0
        %1706 = vmatpush1.msra.mxu0 0.0
        %1707 = vmatprep.subr.mxu0 0.0
        %1708 = vmatpush1.msra.mxu0 0.0
        %1709 = vmatprep.subr.mxu0 0.0
        %1710 = vmatpush1.msra.mxu0 0.0
        %1711 = vmatprep.subr.mxu0 0.0
        %1712 = vmatpush1.msra.mxu0 0.0
        %1713 = vmatprep.subr.mxu0 0.0
        %1714 = vmatpush1.msra.mxu0 0.0
        %1715 = vmatprep.subr.mxu0 0.0
        %1716 = vmatpush1.msra.mxu0 0.0
        %1717 = vmatprep.subr.mxu0 0.0
        %1718 = vmatpush1.msra.mxu0 0.0
        %1719 = vmatprep.subr.mxu0 0.0
        %1720 = vmatpush1.msra.mxu0 0.0
        %1721 = vmatprep.subr.mxu0 0.0
        %1722 = vmatpush1.msra.mxu0 0.0
        %1723 = vmatprep.subr.mxu0 0.0
        %1724 = vmatpush1.msra.mxu0 0.0
        %1725 = vmatprep.subr.mxu0 0.0
        %1726 = vmatpush1.msra.mxu0 0.0
        %1727 = vmatprep.subr.mxu0 0.0
        %1728 = vmatpush1.msra.mxu0 0.0
        %1729 = vmatprep.subr.mxu0 0.0
        %1730 = vmatpush1.msra.mxu0 0.0
        %1731 = vmatprep.subr.mxu0 0.0
        %1732 = vmatpush1.msra.mxu0 0.0
        %1733 = vmatprep.subr.mxu0 0.0
        %1734 = vmatpush1.msra.mxu0 0.0
        %1735 = vmatprep.mubr.f32.mxu0 0.0
        %1736 = vmatmul.mubr.f32.gmra.mrb[0].mxu0 %v1666
        %v1737 = vpop.f32.mrb[0].mxu0
        %v1738 = vadd.f32 0.0, %v1737
        %v1739 = vpop.f32.mrb[0].mxu0
        %1740 = vmatprep.mubr.f32.mxu0 0.0
        %1741 = vmatmul.mubr.f32.gmra.mrb[0].mxu0 %v1669
        %v1742 = vpop.f32.mrb[0].mxu0
        %v1743 = vadd.f32 0.0, %v1742
        %v1744 = vpop.f32.mrb[0].mxu0
        %1745 = vdwg.mxu0
        %v1747 = vsel %vm323, %v1545, 0
        %v1750 = vsel %vm323, %v1546, 0
        %1752 = vmatprep.subr.mxu0 0.0
        %1753 = vmatpush1.msra.mxu0 %v1566
        %1754 = vmatprep.subr.mxu0 0.0
        %1755 = vmatpush1.msra.mxu0 %v1567
        %1756 = vmatprep.subr.mxu0 0.0
        %1757 = vmatpush1.msra.mxu0 %v1568
        %1758 = vmatprep.subr.mxu0 0.0
        %1759 = vmatpush1.msra.mxu0 %v1569
        %1760 = vmatprep.subr.mxu0 0.0
        %1761 = vmatpush1.msra.mxu0 0.0
        %1762 = vmatprep.subr.mxu0 0.0
        %1763 = vmatpush1.msra.mxu0 0.0
        %1764 = vmatprep.subr.mxu0 0.0
        %1765 = vmatpush1.msra.mxu0 0.0
        %1766 = vmatprep.subr.mxu0 0.0
        %1767 = vmatpush1.msra.mxu0 0.0
        %1768 = vmatprep.subr.mxu0 0.0
        %1769 = vmatpush1.msra.mxu0 0.0
        %1770 = vmatprep.subr.mxu0 0.0
        %1771 = vmatpush1.msra.mxu0 0.0
        %1772 = vmatprep.subr.mxu0 0.0
        %1773 = vmatpush1.msra.mxu0 0.0
        %1774 = vmatprep.subr.mxu0 0.0
        %1775 = vmatpush1.msra.mxu0 0.0
        %1776 = vmatprep.subr.mxu0 0.0
        %1777 = vmatpush1.msra.mxu0 0.0
        %1778 = vmatprep.subr.mxu0 0.0
        %1779 = vmatpush1.msra.mxu0 0.0
        %1780 = vmatprep.subr.mxu0 0.0
        %1781 = vmatpush1.msra.mxu0 0.0
        %1782 = vmatprep.subr.mxu0 0.0
        %1783 = vmatpush1.msra.mxu0 0.0
        %1784 = vmatprep.subr.mxu0 0.0
        %1785 = vmatpush1.msra.mxu0 0.0
        %1786 = vmatprep.subr.mxu0 0.0
        %1787 = vmatpush1.msra.mxu0 0.0
        %1788 = vmatprep.subr.mxu0 0.0
        %1789 = vmatpush1.msra.mxu0 0.0
        %1790 = vmatprep.subr.mxu0 0.0
        %1791 = vmatpush1.msra.mxu0 0.0
        %1792 = vmatprep.subr.mxu0 0.0
        %1793 = vmatpush1.msra.mxu0 0.0
        %1794 = vmatprep.subr.mxu0 0.0
        %1795 = vmatpush1.msra.mxu0 0.0
        %1796 = vmatprep.subr.mxu0 0.0
        %1797 = vmatpush1.msra.mxu0 0.0
        %1798 = vmatprep.subr.mxu0 0.0
        %1799 = vmatpush1.msra.mxu0 0.0
        %1800 = vmatprep.subr.mxu0 0.0
        %1801 = vmatpush1.msra.mxu0 0.0
        %1802 = vmatprep.subr.mxu0 0.0
        %1803 = vmatpush1.msra.mxu0 0.0
        %1804 = vmatprep.subr.mxu0 0.0
        %1805 = vmatpush1.msra.mxu0 0.0
        %1806 = vmatprep.subr.mxu0 0.0
        %1807 = vmatpush1.msra.mxu0 0.0
        %1808 = vmatprep.subr.mxu0 0.0
        %1809 = vmatpush1.msra.mxu0 0.0
        %1810 = vmatprep.subr.mxu0 0.0
        %1811 = vmatpush1.msra.mxu0 0.0
        %1812 = vmatprep.subr.mxu0 0.0
        %1813 = vmatpush1.msra.mxu0 0.0
        %1814 = vmatprep.subr.mxu0 0.0
        %1815 = vmatpush1.msra.mxu0 0.0
        %1816 = vmatprep.mubr.f32.mxu0 0.0
        %1817 = vmatmul.mubr.f32.gmra.mrb[0].mxu0 %v1747
        %v1818 = vpop.f32.mrb[0].mxu0
        %v1819 = vadd.f32 0.0, %v1818
        %v1820 = vpop.f32.mrb[0].mxu0
        %1821 = vmatprep.mubr.f32.mxu0 0.0
        %1822 = vmatmul.mubr.f32.gmra.mrb[0].mxu0 %v1750
        %v1823 = vpop.f32.mrb[0].mxu0
        %v1824 = vadd.f32 0.0, %v1823
        %v1825 = vpop.f32.mrb[0].mxu0
        %1826 = vdwg.mxu0
        %v1828 = vsel %vm323, %v1547, 0
        %v1831 = vsel %vm323, %v1548, 0
        %1833 = vmatprep.subr.mxu0 0.0
        %1834 = vmatpush1.msra.mxu0 %v1570
        %1835 = vmatprep.subr.mxu0 0.0
        %1836 = vmatpush1.msra.mxu0 %v1571
        %1837 = vmatprep.subr.mxu0 0.0
        %1838 = vmatpush1.msra.mxu0 %v1572
        %1839 = vmatprep.subr.mxu0 0.0
        %1840 = vmatpush1.msra.mxu0 %v1573
        %1841 = vmatprep.subr.mxu0 0.0
        %1842 = vmatpush1.msra.mxu0 0.0
        %1843 = vmatprep.subr.mxu0 0.0
        %1844 = vmatpush1.msra.mxu0 0.0
        %1845 = vmatprep.subr.mxu0 0.0
        %1846 = vmatpush1.msra.mxu0 0.0
        %1847 = vmatprep.subr.mxu0 0.0
        %1848 = vmatpush1.msra.mxu0 0.0
        %1849 = vmatprep.subr.mxu0 0.0
        %1850 = vmatpush1.msra.mxu0 0.0
        %1851 = vmatprep.subr.mxu0 0.0
        %1852 = vmatpush1.msra.mxu0 0.0
        %1853 = vmatprep.subr.mxu0 0.0
        %1854 = vmatpush1.msra.mxu0 0.0
        %1855 = vmatprep.subr.mxu0 0.0
        %1856 = vmatpush1.msra.mxu0 0.0
        %1857 = vmatprep.subr.mxu0 0.0
        %1858 = vmatpush1.msra.mxu0 0.0
        %1859 = vmatprep.subr.mxu0 0.0
        %1860 = vmatpush1.msra.mxu0 0.0
        %1861 = vmatprep.subr.mxu0 0.0
        %1862 = vmatpush1.msra.mxu0 0.0
        %1863 = vmatprep.subr.mxu0 0.0
        %1864 = vmatpush1.msra.mxu0 0.0
        %1865 = vmatprep.subr.mxu0 0.0
        %1866 = vmatpush1.msra.mxu0 0.0
        %1867 = vmatprep.subr.mxu0 0.0
        %1868 = vmatpush1.msra.mxu0 0.0
        %1869 = vmatprep.subr.mxu0 0.0
        %1870 = vmatpush1.msra.mxu0 0.0
        %1871 = vmatprep.subr.mxu0 0.0
        %1872 = vmatpush1.msra.mxu0 0.0
        %1873 = vmatprep.subr.mxu0 0.0
        %1874 = vmatpush1.msra.mxu0 0.0
        %1875 = vmatprep.subr.mxu0 0.0
        %1876 = vmatpush1.msra.mxu0 0.0
        %1877 = vmatprep.subr.mxu0 0.0
        %1878 = vmatpush1.msra.mxu0 0.0
        %1879 = vmatprep.subr.mxu0 0.0
        %1880 = vmatpush1.msra.mxu0 0.0
        %1881 = vmatprep.subr.mxu0 0.0
        %1882 = vmatpush1.msra.mxu0 0.0
        %1883 = vmatprep.subr.mxu0 0.0
        %1884 = vmatpush1.msra.mxu0 0.0
        %1885 = vmatprep.subr.mxu0 0.0
        %1886 = vmatpush1.msra.mxu0 0.0
        %1887 = vmatprep.subr.mxu0 0.0
        %1888 = vmatpush1.msra.mxu0 0.0
        %1889 = vmatprep.subr.mxu0 0.0
        %1890 = vmatpush1.msra.mxu0 0.0
        %1891 = vmatprep.subr.mxu0 0.0
        %1892 = vmatpush1.msra.mxu0 0.0
        %1893 = vmatprep.subr.mxu0 0.0
        %1894 = vmatpush1.msra.mxu0 0.0
        %1895 = vmatprep.subr.mxu0 0.0
        %1896 = vmatpush1.msra.mxu0 0.0
        %1897 = vmatprep.mubr.f32.mxu0 0.0
        %1898 = vmatmul.mubr.f32.gmra.mrb[0].mxu0 %v1828
        %v1899 = vpop.f32.mrb[0].mxu0
        %v1900 = vadd.f32 0.0, %v1899
        %v1901 = vpop.f32.mrb[0].mxu0
        %1902 = vmatprep.mubr.f32.mxu0 0.0
        %1903 = vmatmul.mubr.f32.gmra.mrb[0].mxu0 %v1831
        %v1904 = vpop.f32.mrb[0].mxu0
        %v1905 = vadd.f32 0.0, %v1904
        %v1906 = vpop.f32.mrb[0].mxu0
        %1907 = vdwg.mxu0
        %v1912 = vlaneseq
        %v1913 = vshrl.u32 %v1912, 7
        %v1914 = vsub.s32 0, %v1913
        %v1915 = vrot.slane %v1575, %v1914
        %v1916 = vlaneseq
        %v1917 = vshrl.u32 %v1916, 7
        %v1918 = vsub.s32 0, %v1917
        %v1919 = vrot.slane %v1576, %v1918
        %v1920 = vlaneseq
        %v1921 = vshrl.u32 %v1920, 7
        %v1922 = vsub.s32 0, %v1921
        %v1923 = vrot.slane %v1577, %v1922
        %v1924 = vlaneseq
        %v1925 = vshrl.u32 %v1924, 7
        %v1926 = vsub.s32 0, %v1925
        %v1927 = vrot.slane %v1578, %v1926
        %v1932 = vmul.f32 %v1657, %v1915
        %v1933 = vmul.f32 %v1662, %v1915
        %v1934 = vmul.f32 %v1738, %v1919
        %v1935 = vmul.f32 %v1743, %v1919
        %v1936 = vmul.f32 %v1819, %v1923
        %v1937 = vmul.f32 %v1824, %v1923
        %v1938 = vmul.f32 %v1900, %v1927
        %v1939 = vmul.f32 %v1905, %v1927
        %v1940 = vsel %vm323, %v1932, 0.0
        %1941 = vadd.xlane.f32.xlu0 %v1940
        %v1942 = vpop.xlane.xlu0 %1941
        %v1943 = vsel %vm323, %v1933, 0.0
        %1944 = vadd.xlane.f32.xlu0 %v1943
        %v1945 = vpop.xlane.xlu0 %1944
        %v1946 = vsel %vm323, %v1934, 0.0
        %1947 = vadd.xlane.f32.xlu0 %v1946
        %v1948 = vpop.xlane.xlu0 %1947
        %v1949 = vsel %vm323, %v1935, 0.0
        %1950 = vadd.xlane.f32.xlu0 %v1949
        %v1951 = vpop.xlane.xlu0 %1950
        %v1952 = vsel %vm323, %v1936, 0.0
        %1953 = vadd.xlane.f32.xlu0 %v1952
        %v1954 = vpop.xlane.xlu0 %1953
        %v1955 = vsel %vm323, %v1937, 0.0
        %1956 = vadd.xlane.f32.xlu0 %v1955
        %v1957 = vpop.xlane.xlu0 %1956
        %v1958 = vsel %vm323, %v1938, 0.0
        %1959 = vadd.xlane.f32.xlu0 %v1958
        %v1960 = vpop.xlane.xlu0 %1959
        %v1961 = vsel %vm323, %v1939, 0.0
        %1962 = vadd.xlane.f32.xlu0 %v1961
        %v1963 = vpop.xlane.xlu0 %1962
        %v1965 = vsel %vm323, %v1580, 0
        %v1968 = vsel %vm323, %v1657, 0
        %v1971 = vsel %vm323, %v1662, 0
        %1973 = vmatprep.subr.mxu0 0.0
        %1974 = vmatpush1.xpose.msra.mxu0 %v1968
        %1975 = vmatprep.subr.mxu0 0.0
        %1976 = vmatpush1.xpose.msra.mxu0 %v1971
        %1977 = vmatprep.subr.mxu0 0.0
        %1978 = vmatpush1.xpose.msra.mxu0 0.0
        %1979 = vmatprep.subr.mxu0 0.0
        %1980 = vmatpush1.xpose.msra.mxu0 0.0
        %1981 = vmatprep.subr.mxu0 0.0
        %1982 = vmatpush1.xpose.msra.mxu0 0.0
        %1983 = vmatprep.subr.mxu0 0.0
        %1984 = vmatpush1.xpose.msra.mxu0 0.0
        %1985 = vmatprep.subr.mxu0 0.0
        %1986 = vmatpush1.xpose.msra.mxu0 0.0
        %1987 = vmatprep.subr.mxu0 0.0
        %1988 = vmatpush1.xpose.msra.mxu0 0.0
        %1989 = vmatprep.subr.mxu0 0.0
        %1990 = vmatpush1.xpose.msra.mxu0 0.0
        %1991 = vmatprep.subr.mxu0 0.0
        %1992 = vmatpush1.xpose.msra.mxu0 0.0
        %1993 = vmatprep.subr.mxu0 0.0
        %1994 = vmatpush1.xpose.msra.mxu0 0.0
        %1995 = vmatprep.subr.mxu0 0.0
        %1996 = vmatpush1.xpose.msra.mxu0 0.0
        %1997 = vmatprep.subr.mxu0 0.0
        %1998 = vmatpush1.xpose.msra.mxu0 0.0
        %1999 = vmatprep.subr.mxu0 0.0
        %2000 = vmatpush1.xpose.msra.mxu0 0.0
        %2001 = vmatprep.subr.mxu0 0.0
        %2002 = vmatpush1.xpose.msra.mxu0 0.0
        %2003 = vmatprep.subr.mxu0 0.0
        %2004 = vmatpush1.xpose.msra.mxu0 0.0
        %2005 = vmatprep.subr.mxu0 0.0
        %2006 = vmatpush1.xpose.msra.mxu0 0.0
        %2007 = vmatprep.subr.mxu0 0.0
        %2008 = vmatpush1.xpose.msra.mxu0 0.0
        %2009 = vmatprep.subr.mxu0 0.0
        %2010 = vmatpush1.xpose.msra.mxu0 0.0
        %2011 = vmatprep.subr.mxu0 0.0
        %2012 = vmatpush1.xpose.msra.mxu0 0.0
        %2013 = vmatprep.subr.mxu0 0.0
        %2014 = vmatpush1.xpose.msra.mxu0 0.0
        %2015 = vmatprep.subr.mxu0 0.0
        %2016 = vmatpush1.xpose.msra.mxu0 0.0
        %2017 = vmatprep.subr.mxu0 0.0
        %2018 = vmatpush1.xpose.msra.mxu0 0.0
        %2019 = vmatprep.subr.mxu0 0.0
        %2020 = vmatpush1.xpose.msra.mxu0 0.0
        %2021 = vmatprep.subr.mxu0 0.0
        %2022 = vmatpush1.xpose.msra.mxu0 0.0
        %2023 = vmatprep.subr.mxu0 0.0
        %2024 = vmatpush1.xpose.msra.mxu0 0.0
        %2025 = vmatprep.subr.mxu0 0.0
        %2026 = vmatpush1.xpose.msra.mxu0 0.0
        %2027 = vmatprep.subr.mxu0 0.0
        %2028 = vmatpush1.xpose.msra.mxu0 0.0
        %2029 = vmatprep.subr.mxu0 0.0
        %2030 = vmatpush1.xpose.msra.mxu0 0.0
        %2031 = vmatprep.subr.mxu0 0.0
        %2032 = vmatpush1.xpose.msra.mxu0 0.0
        %2033 = vmatprep.subr.mxu0 0.0
        %2034 = vmatpush1.xpose.msra.mxu0 0.0
        %2035 = vmatprep.subr.mxu0 0.0
        %2036 = vmatpush1.xpose.msra.mxu0 0.0
        %2037 = vmatprep.mubr.f32.mxu0 0.0
        %2038 = vmatmul.mubr.f32.gmra.mrb[0].mxu0 %v1965
        %v2039 = vpop.f32.mrb[0].mxu0
        %v2040 = vadd.f32 0.0, %v2039
        %v2041 = vpop.f32.mrb[0].mxu0
        %2042 = vdwg.mxu0
        %v2044 = vsel %vm323, %v1581, 0
        %v2047 = vsel %vm323, %v1738, 0
        %v2050 = vsel %vm323, %v1743, 0
        %2052 = vmatprep.subr.mxu0 0.0
        %2053 = vmatpush1.xpose.msra.mxu0 %v2047
        %2054 = vmatprep.subr.mxu0 0.0
        %2055 = vmatpush1.xpose.msra.mxu0 %v2050
        %2056 = vmatprep.subr.mxu0 0.0
        %2057 = vmatpush1.xpose.msra.mxu0 0.0
        %2058 = vmatprep.subr.mxu0 0.0
        %2059 = vmatpush1.xpose.msra.mxu0 0.0
        %2060 = vmatprep.subr.mxu0 0.0
        %2061 = vmatpush1.xpose.msra.mxu0 0.0
        %2062 = vmatprep.subr.mxu0 0.0
        %2063 = vmatpush1.xpose.msra.mxu0 0.0
        %2064 = vmatprep.subr.mxu0 0.0
        %2065 = vmatpush1.xpose.msra.mxu0 0.0
        %2066 = vmatprep.subr.mxu0 0.0
        %2067 = vmatpush1.xpose.msra.mxu0 0.0
        %2068 = vmatprep.subr.mxu0 0.0
        %2069 = vmatpush1.xpose.msra.mxu0 0.0
        %2070 = vmatprep.subr.mxu0 0.0
        %2071 = vmatpush1.xpose.msra.mxu0 0.0
        %2072 = vmatprep.subr.mxu0 0.0
        %2073 = vmatpush1.xpose.msra.mxu0 0.0
        %2074 = vmatprep.subr.mxu0 0.0
        %2075 = vmatpush1.xpose.msra.mxu0 0.0
        %2076 = vmatprep.subr.mxu0 0.0
        %2077 = vmatpush1.xpose.msra.mxu0 0.0
        %2078 = vmatprep.subr.mxu0 0.0
        %2079 = vmatpush1.xpose.msra.mxu0 0.0
        %2080 = vmatprep.subr.mxu0 0.0
        %2081 = vmatpush1.xpose.msra.mxu0 0.0
        %2082 = vmatprep.subr.mxu0 0.0
        %2083 = vmatpush1.xpose.msra.mxu0 0.0
        %2084 = vmatprep.subr.mxu0 0.0
        %2085 = vmatpush1.xpose.msra.mxu0 0.0
        %2086 = vmatprep.subr.mxu0 0.0
        %2087 = vmatpush1.xpose.msra.mxu0 0.0
        %2088 = vmatprep.subr.mxu0 0.0
        %2089 = vmatpush1.xpose.msra.mxu0 0.0
        %2090 = vmatprep.subr.mxu0 0.0
        %2091 = vmatpush1.xpose.msra.mxu0 0.0
        %2092 = vmatprep.subr.mxu0 0.0
        %2093 = vmatpush1.xpose.msra.mxu0 0.0
        %2094 = vmatprep.subr.mxu0 0.0
        %2095 = vmatpush1.xpose.msra.mxu0 0.0
        %2096 = vmatprep.subr.mxu0 0.0
        %2097 = vmatpush1.xpose.msra.mxu0 0.0
        %2098 = vmatprep.subr.mxu0 0.0
        %2099 = vmatpush1.xpose.msra.mxu0 0.0
        %2100 = vmatprep.subr.mxu0 0.0
        %2101 = vmatpush1.xpose.msra.mxu0 0.0
        %2102 = vmatprep.subr.mxu0 0.0
        %2103 = vmatpush1.xpose.msra.mxu0 0.0
        %2104 = vmatprep.subr.mxu0 0.0
        %2105 = vmatpush1.xpose.msra.mxu0 0.0
        %2106 = vmatprep.subr.mxu0 0.0
        %2107 = vmatpush1.xpose.msra.mxu0 0.0
        %2108 = vmatprep.subr.mxu0 0.0
        %2109 = vmatpush1.xpose.msra.mxu0 0.0
        %2110 = vmatprep.subr.mxu0 0.0
        %2111 = vmatpush1.xpose.msra.mxu0 0.0
        %2112 = vmatprep.subr.mxu0 0.0
        %2113 = vmatpush1.xpose.msra.mxu0 0.0
        %2114 = vmatprep.subr.mxu0 0.0
        %2115 = vmatpush1.xpose.msra.mxu0 0.0
        %2116 = vmatprep.mubr.f32.mxu0 0.0
        %2117 = vmatmul.mubr.f32.gmra.mrb[0].mxu0 %v2044
        %v2118 = vpop.f32.mrb[0].mxu0
        %v2119 = vadd.f32 0.0, %v2118
        %v2120 = vpop.f32.mrb[0].mxu0
        %2121 = vdwg.mxu0
        %v2123 = vsel %vm323, %v1582, 0
        %v2126 = vsel %vm323, %v1819, 0
        %v2129 = vsel %vm323, %v1824, 0
        %2131 = vmatprep.subr.mxu0 0.0
        %2132 = vmatpush1.xpose.msra.mxu0 %v2126
        %2133 = vmatprep.subr.mxu0 0.0
        %2134 = vmatpush1.xpose.msra.mxu0 %v2129
        %2135 = vmatprep.subr.mxu0 0.0
        %2136 = vmatpush1.xpose.msra.mxu0 0.0
        %2137 = vmatprep.subr.mxu0 0.0
        %2138 = vmatpush1.xpose.msra.mxu0 0.0
        %2139 = vmatprep.subr.mxu0 0.0
        %2140 = vmatpush1.xpose.msra.mxu0 0.0
        %2141 = vmatprep.subr.mxu0 0.0
        %2142 = vmatpush1.xpose.msra.mxu0 0.0
        %2143 = vmatprep.subr.mxu0 0.0
        %2144 = vmatpush1.xpose.msra.mxu0 0.0
        %2145 = vmatprep.subr.mxu0 0.0
        %2146 = vmatpush1.xpose.msra.mxu0 0.0
        %2147 = vmatprep.subr.mxu0 0.0
        %2148 = vmatpush1.xpose.msra.mxu0 0.0
        %2149 = vmatprep.subr.mxu0 0.0
        %2150 = vmatpush1.xpose.msra.mxu0 0.0
        %2151 = vmatprep.subr.mxu0 0.0
        %2152 = vmatpush1.xpose.msra.mxu0 0.0
        %2153 = vmatprep.subr.mxu0 0.0
        %2154 = vmatpush1.xpose.msra.mxu0 0.0
        %2155 = vmatprep.subr.mxu0 0.0
        %2156 = vmatpush1.xpose.msra.mxu0 0.0
        %2157 = vmatprep.subr.mxu0 0.0
        %2158 = vmatpush1.xpose.msra.mxu0 0.0
        %2159 = vmatprep.subr.mxu0 0.0
        %2160 = vmatpush1.xpose.msra.mxu0 0.0
        %2161 = vmatprep.subr.mxu0 0.0
        %2162 = vmatpush1.xpose.msra.mxu0 0.0
        %2163 = vmatprep.subr.mxu0 0.0
        %2164 = vmatpush1.xpose.msra.mxu0 0.0
        %2165 = vmatprep.subr.mxu0 0.0
        %2166 = vmatpush1.xpose.msra.mxu0 0.0
        %2167 = vmatprep.subr.mxu0 0.0
        %2168 = vmatpush1.xpose.msra.mxu0 0.0
        %2169 = vmatprep.subr.mxu0 0.0
        %2170 = vmatpush1.xpose.msra.mxu0 0.0
        %2171 = vmatprep.subr.mxu0 0.0
        %2172 = vmatpush1.xpose.msra.mxu0 0.0
        %2173 = vmatprep.subr.mxu0 0.0
        %2174 = vmatpush1.xpose.msra.mxu0 0.0
        %2175 = vmatprep.subr.mxu0 0.0
        %2176 = vmatpush1.xpose.msra.mxu0 0.0
        %2177 = vmatprep.subr.mxu0 0.0
        %2178 = vmatpush1.xpose.msra.mxu0 0.0
        %2179 = vmatprep.subr.mxu0 0.0
        %2180 = vmatpush1.xpose.msra.mxu0 0.0
        %2181 = vmatprep.subr.mxu0 0.0
        %2182 = vmatpush1.xpose.msra.mxu0 0.0
        %2183 = vmatprep.subr.mxu0 0.0
        %2184 = vmatpush1.xpose.msra.mxu0 0.0
        %2185 = vmatprep.subr.mxu0 0.0
        %2186 = vmatpush1.xpose.msra.mxu0 0.0
        %2187 = vmatprep.subr.mxu0 0.0
        %2188 = vmatpush1.xpose.msra.mxu0 0.0
        %2189 = vmatprep.subr.mxu0 0.0
        %2190 = vmatpush1.xpose.msra.mxu0 0.0
        %2191 = vmatprep.subr.mxu0 0.0
        %2192 = vmatpush1.xpose.msra.mxu0 0.0
        %2193 = vmatprep.subr.mxu0 0.0
        %2194 = vmatpush1.xpose.msra.mxu0 0.0
        %2195 = vmatprep.mubr.f32.mxu0 0.0
        %2196 = vmatmul.mubr.f32.gmra.mrb[0].mxu0 %v2123
        %v2197 = vpop.f32.mrb[0].mxu0
        %v2198 = vadd.f32 0.0, %v2197
        %v2199 = vpop.f32.mrb[0].mxu0
        %2200 = vdwg.mxu0
        %v2202 = vsel %vm323, %v1583, 0
        %v2205 = vsel %vm323, %v1900, 0
        %v2208 = vsel %vm323, %v1905, 0
        %2210 = vmatprep.subr.mxu0 0.0
        %2211 = vmatpush1.xpose.msra.mxu0 %v2205
        %2212 = vmatprep.subr.mxu0 0.0
        %2213 = vmatpush1.xpose.msra.mxu0 %v2208
        %2214 = vmatprep.subr.mxu0 0.0
        %2215 = vmatpush1.xpose.msra.mxu0 0.0
        %2216 = vmatprep.subr.mxu0 0.0
        %2217 = vmatpush1.xpose.msra.mxu0 0.0
        %2218 = vmatprep.subr.mxu0 0.0
        %2219 = vmatpush1.xpose.msra.mxu0 0.0
        %2220 = vmatprep.subr.mxu0 0.0
        %2221 = vmatpush1.xpose.msra.mxu0 0.0
        %2222 = vmatprep.subr.mxu0 0.0
        %2223 = vmatpush1.xpose.msra.mxu0 0.0
        %2224 = vmatprep.subr.mxu0 0.0
        %2225 = vmatpush1.xpose.msra.mxu0 0.0
        %2226 = vmatprep.subr.mxu0 0.0
        %2227 = vmatpush1.xpose.msra.mxu0 0.0
        %2228 = vmatprep.subr.mxu0 0.0
        %2229 = vmatpush1.xpose.msra.mxu0 0.0
        %2230 = vmatprep.subr.mxu0 0.0
        %2231 = vmatpush1.xpose.msra.mxu0 0.0
        %2232 = vmatprep.subr.mxu0 0.0
        %2233 = vmatpush1.xpose.msra.mxu0 0.0
        %2234 = vmatprep.subr.mxu0 0.0
        %2235 = vmatpush1.xpose.msra.mxu0 0.0
        %2236 = vmatprep.subr.mxu0 0.0
        %2237 = vmatpush1.xpose.msra.mxu0 0.0
        %2238 = vmatprep.subr.mxu0 0.0
        %2239 = vmatpush1.xpose.msra.mxu0 0.0
        %2240 = vmatprep.subr.mxu0 0.0
        %2241 = vmatpush1.xpose.msra.mxu0 0.0
        %2242 = vmatprep.subr.mxu0 0.0
        %2243 = vmatpush1.xpose.msra.mxu0 0.0
        %2244 = vmatprep.subr.mxu0 0.0
        %2245 = vmatpush1.xpose.msra.mxu0 0.0
        %2246 = vmatprep.subr.mxu0 0.0
        %2247 = vmatpush1.xpose.msra.mxu0 0.0
        %2248 = vmatprep.subr.mxu0 0.0
        %2249 = vmatpush1.xpose.msra.mxu0 0.0
        %2250 = vmatprep.subr.mxu0 0.0
        %2251 = vmatpush1.xpose.msra.mxu0 0.0
        %2252 = vmatprep.subr.mxu0 0.0
        %2253 = vmatpush1.xpose.msra.mxu0 0.0
        %2254 = vmatprep.subr.mxu0 0.0
        %2255 = vmatpush1.xpose.msra.mxu0 0.0
        %2256 = vmatprep.subr.mxu0 0.0
        %2257 = vmatpush1.xpose.msra.mxu0 0.0
        %2258 = vmatprep.subr.mxu0 0.0
        %2259 = vmatpush1.xpose.msra.mxu0 0.0
        %2260 = vmatprep.subr.mxu0 0.0
        %2261 = vmatpush1.xpose.msra.mxu0 0.0
        %2262 = vmatprep.subr.mxu0 0.0
        %2263 = vmatpush1.xpose.msra.mxu0 0.0
        %2264 = vmatprep.subr.mxu0 0.0
        %2265 = vmatpush1.xpose.msra.mxu0 0.0
        %2266 = vmatprep.subr.mxu0 0.0
        %2267 = vmatpush1.xpose.msra.mxu0 0.0
        %2268 = vmatprep.subr.mxu0 0.0
        %2269 = vmatpush1.xpose.msra.mxu0 0.0
        %2270 = vmatprep.subr.mxu0 0.0
        %2271 = vmatpush1.xpose.msra.mxu0 0.0
        %2272 = vmatprep.subr.mxu0 0.0
        %2273 = vmatpush1.xpose.msra.mxu0 0.0
        %2274 = vmatprep.mubr.f32.mxu0 0.0
        %2275 = vmatmul.mubr.f32.gmra.mrb[0].mxu0 %v2202
        %v2276 = vpop.f32.mrb[0].mxu0
        %v2277 = vadd.f32 0.0, %v2276
        %v2278 = vpop.f32.mrb[0].mxu0
        %2279 = vdwg.mxu0
        %v2280 = vlaneseq
        %v2281 = vshrl.u32 %v2280, 7
        %v2282 = vsub.s32 0, %v2281
        %v2283 = vrot.slane %v2040, %v2282
        %v2284 = vlaneseq
        %v2285 = vshrl.u32 %v2284, 7
        %v2286 = vsub.s32 0, %v2285
        %v2287 = vrot.slane %v2119, %v2286
        %v2288 = vlaneseq
        %v2289 = vshrl.u32 %v2288, 7
        %v2290 = vsub.s32 0, %v2289
        %v2291 = vrot.slane %v2198, %v2290
        %v2292 = vlaneseq
        %v2293 = vshrl.u32 %v2292, 7
        %v2294 = vsub.s32 0, %v2293
        %v2295 = vrot.slane %v2277, %v2294
        %v2296 = vadd.f32 %v1942, %v2283
        %v2297 = vadd.f32 %v1945, %v2283
        %v2298 = vadd.f32 %v1948, %v2287
        %v2299 = vadd.f32 %v1951, %v2287
        %v2300 = vadd.f32 %v1954, %v2291
        %v2301 = vadd.f32 %v1957, %v2291
        %v2302 = vadd.f32 %v1960, %v2295
        %v2303 = vadd.f32 %v1963, %v2295
        %vm2304 = vcmp.gt.f32.partialorder %v2296, 0.0
        %vm2305 = vcmp.gt.f32.partialorder %v2297, 0.0
        %vm2306 = vcmp.gt.f32.partialorder %v2298, 0.0
        %vm2307 = vcmp.gt.f32.partialorder %v2299, 0.0
        %vm2308 = vcmp.gt.f32.partialorder %v2300, 0.0
        %vm2309 = vcmp.gt.f32.partialorder %v2301, 0.0
        %vm2310 = vcmp.gt.f32.partialorder %v2302, 0.0
        %vm2311 = vcmp.gt.f32.partialorder %v2303, 0.0
        %v2312 = vmul.f32 %v2296, 0.1
        %v2313 = vmul.f32 %v2297, 0.1
        %v2314 = vmul.f32 %v2298, 0.1
        %v2315 = vmul.f32 %v2299, 0.1
        %v2316 = vmul.f32 %v2300, 0.1
        %v2317 = vmul.f32 %v2301, 0.1
        %v2318 = vmul.f32 %v2302, 0.1
        %v2319 = vmul.f32 %v2303, 0.1
        %v2320 = vsel %vm2304, %v2296, %v2312
        %v2321 = vsel %vm2305, %v2297, %v2313
        %v2322 = vsel %vm2306, %v2298, %v2314
        %v2323 = vsel %vm2307, %v2299, %v2315
        %v2324 = vsel %vm2308, %v2300, %v2316
        %v2325 = vsel %vm2309, %v2301, %v2317
        %v2326 = vsel %vm2310, %v2302, %v2318
        %v2327 = vsel %vm2311, %v2303, %v2319
        %v2328 = vsel %vm1070, %v2320, -9e+15
        %v2329 = vsel %vm1071, %v2321, -9e+15
        %v2330 = vsel %vm1070, %v2322, -9e+15
        %v2331 = vsel %vm1071, %v2323, -9e+15
        %v2332 = vsel %vm1070, %v2324, -9e+15
        %v2333 = vsel %vm1071, %v2325, -9e+15
        %v2334 = vsel %vm1070, %v2326, -9e+15
        %v2335 = vsel %vm1071, %v2327, -9e+15
        %v2336 = vmul.f32 %v2328, 2000.0
        %v2337 = vmul.f32 %v2329, 2000.0
        %v2338 = vmul.f32 %v2330, 2000.0
        %v2339 = vmul.f32 %v2331, 2000.0
        %v2340 = vmul.f32 %v2332, 2000.0
        %v2341 = vmul.f32 %v2333, 2000.0
        %v2342 = vmul.f32 %v2334, 2000.0
        %v2343 = vmul.f32 %v2335, 2000.0
        %v2344 = vsel %vm1088, %v2336, -inf
        %2345 = vmax.xlane.f32.xlu0 %v2344
        %v2346 = vpop.xlane.xlu0 %2345
        %v2347 = vsel %vm1088, %v2337, -inf
        %2348 = vmax.xlane.f32.xlu0 %v2347
        %v2349 = vpop.xlane.xlu0 %2348
        %v2350 = vsel %vm1088, %v2338, -inf
        %2351 = vmax.xlane.f32.xlu0 %v2350
        %v2352 = vpop.xlane.xlu0 %2351
        %v2353 = vsel %vm1088, %v2339, -inf
        %2354 = vmax.xlane.f32.xlu0 %v2353
        %v2355 = vpop.xlane.xlu0 %2354
        %v2356 = vsel %vm1088, %v2340, -inf
        %2357 = vmax.xlane.f32.xlu0 %v2356
        %v2358 = vpop.xlane.xlu0 %2357
        %v2359 = vsel %vm1088, %v2341, -inf
        %2360 = vmax.xlane.f32.xlu0 %v2359
        %v2361 = vpop.xlane.xlu0 %2360
        %v2362 = vsel %vm1088, %v2342, -inf
        %2363 = vmax.xlane.f32.xlu0 %v2362
        %v2364 = vpop.xlane.xlu0 %2363
        %v2365 = vsel %vm1088, %v2343, -inf
        %2366 = vmax.xlane.f32.xlu0 %v2365
        %v2367 = vpop.xlane.xlu0 %2366
        %v2368 = vsub.f32 %v2336, %v2346
        %v2369 = vsub.f32 %v2337, %v2349
        %v2370 = vsub.f32 %v2338, %v2352
        %v2371 = vsub.f32 %v2339, %v2355
        %v2372 = vsub.f32 %v2340, %v2358
        %v2373 = vsub.f32 %v2341, %v2361
        %v2374 = vsub.f32 %v2342, %v2364
        %v2375 = vsub.f32 %v2343, %v2367
        %v2376 = vmul.f32 %v2368, 1.442695
        %v2377 = vpow.pop %v2376
        %v2378 = vmul.f32 %v2369, 1.442695
        %v2379 = vpow.pop %v2378
        %v2380 = vmul.f32 %v2370, 1.442695
        %v2381 = vpow.pop %v2380
        %v2382 = vmul.f32 %v2371, 1.442695
        %v2383 = vpow.pop %v2382
        %v2384 = vmul.f32 %v2372, 1.442695
        %v2385 = vpow.pop %v2384
        %v2386 = vmul.f32 %v2373, 1.442695
        %v2387 = vpow.pop %v2386
        %v2388 = vmul.f32 %v2374, 1.442695
        %v2389 = vpow.pop %v2388
        %v2390 = vmul.f32 %v2375, 1.442695
        %v2391 = vpow.pop %v2390
        %v2392 = vsel %vm1088, %v2377, 0.0
        %2393 = vadd.xlane.f32.xlu0 %v2392
        %v2394 = vpop.xlane.xlu0 %2393
        %v2395 = vsel %vm1088, %v2379, 0.0
        %2396 = vadd.xlane.f32.xlu0 %v2395
        %v2397 = vpop.xlane.xlu0 %2396
        %v2398 = vsel %vm1088, %v2381, 0.0
        %2399 = vadd.xlane.f32.xlu0 %v2398
        %v2400 = vpop.xlane.xlu0 %2399
        %v2401 = vsel %vm1088, %v2383, 0.0
        %2402 = vadd.xlane.f32.xlu0 %v2401
        %v2403 = vpop.xlane.xlu0 %2402
        %v2404 = vsel %vm1088, %v2385, 0.0
        %2405 = vadd.xlane.f32.xlu0 %v2404
        %v2406 = vpop.xlane.xlu0 %2405
        %v2407 = vsel %vm1088, %v2387, 0.0
        %2408 = vadd.xlane.f32.xlu0 %v2407
        %v2409 = vpop.xlane.xlu0 %2408
        %v2410 = vsel %vm1088, %v2389, 0.0
        %2411 = vadd.xlane.f32.xlu0 %v2410
        %v2412 = vpop.xlane.xlu0 %2411
        %v2413 = vsel %vm1088, %v2391, 0.0
        %2414 = vadd.xlane.f32.xlu0 %v2413
        %v2415 = vpop.xlane.xlu0 %2414
        %v2416 = vrcp.pop %v2394
        %v2417 = vmul.f32 %v2377, %v2416
        %v2418 = vrcp.pop %v2397
        %v2419 = vmul.f32 %v2379, %v2418
        %v2420 = vrcp.pop %v2400
        %v2421 = vmul.f32 %v2381, %v2420
        %v2422 = vrcp.pop %v2403
        %v2423 = vmul.f32 %v2383, %v2422
        %v2424 = vrcp.pop %v2406
        %v2425 = vmul.f32 %v2385, %v2424
        %v2426 = vrcp.pop %v2409
        %v2427 = vmul.f32 %v2387, %v2426
        %v2428 = vrcp.pop %v2412
        %v2429 = vmul.f32 %v2389, %v2428
        %v2430 = vrcp.pop %v2415
        %v2431 = vmul.f32 %v2391, %v2430
        %v2433 = vsel %vm1088, %v2417, 0
        %v2436 = vsel %vm1088, %v2419, 0
        %2438 = vmatprep.subr.mxu0 0.0
        %2439 = vmatpush1.msra.mxu0 %v1657
        %2440 = vmatprep.subr.mxu0 0.0
        %2441 = vmatpush1.msra.mxu0 %v1662
        %2442 = vmatprep.subr.mxu0 0.0
        %2443 = vmatpush1.msra.mxu0 0.0
        %2444 = vmatprep.subr.mxu0 0.0
        %2445 = vmatpush1.msra.mxu0 0.0
        %2446 = vmatprep.subr.mxu0 0.0
        %2447 = vmatpush1.msra.mxu0 0.0
        %2448 = vmatprep.subr.mxu0 0.0
        %2449 = vmatpush1.msra.mxu0 0.0
        %2450 = vmatprep.subr.mxu0 0.0
        %2451 = vmatpush1.msra.mxu0 0.0
        %2452 = vmatprep.subr.mxu0 0.0
        %2453 = vmatpush1.msra.mxu0 0.0
        %2454 = vmatprep.subr.mxu0 0.0
        %2455 = vmatpush1.msra.mxu0 0.0
        %2456 = vmatprep.subr.mxu0 0.0
        %2457 = vmatpush1.msra.mxu0 0.0
        %2458 = vmatprep.subr.mxu0 0.0
        %2459 = vmatpush1.msra.mxu0 0.0
        %2460 = vmatprep.subr.mxu0 0.0
        %2461 = vmatpush1.msra.mxu0 0.0
        %2462 = vmatprep.subr.mxu0 0.0
        %2463 = vmatpush1.msra.mxu0 0.0
        %2464 = vmatprep.subr.mxu0 0.0
        %2465 = vmatpush1.msra.mxu0 0.0
        %2466 = vmatprep.subr.mxu0 0.0
        %2467 = vmatpush1.msra.mxu0 0.0
        %2468 = vmatprep.subr.mxu0 0.0
        %2469 = vmatpush1.msra.mxu0 0.0
        %2470 = vmatprep.subr.mxu0 0.0
        %2471 = vmatpush1.msra.mxu0 0.0
        %2472 = vmatprep.subr.mxu0 0.0
        %2473 = vmatpush1.msra.mxu0 0.0
        %2474 = vmatprep.subr.mxu0 0.0
        %2475 = vmatpush1.msra.mxu0 0.0
        %2476 = vmatprep.subr.mxu0 0.0
        %2477 = vmatpush1.msra.mxu0 0.0
        %2478 = vmatprep.subr.mxu0 0.0
        %2479 = vmatpush1.msra.mxu0 0.0
        %2480 = vmatprep.subr.mxu0 0.0
        %2481 = vmatpush1.msra.mxu0 0.0
        %2482 = vmatprep.subr.mxu0 0.0
        %2483 = vmatpush1.msra.mxu0 0.0
        %2484 = vmatprep.subr.mxu0 0.0
        %2485 = vmatpush1.msra.mxu0 0.0
        %2486 = vmatprep.subr.mxu0 0.0
        %2487 = vmatpush1.msra.mxu0 0.0
        %2488 = vmatprep.subr.mxu0 0.0
        %2489 = vmatpush1.msra.mxu0 0.0
        %2490 = vmatprep.subr.mxu0 0.0
        %2491 = vmatpush1.msra.mxu0 0.0
        %2492 = vmatprep.subr.mxu0 0.0
        %2493 = vmatpush1.msra.mxu0 0.0
        %2494 = vmatprep.subr.mxu0 0.0
        %2495 = vmatpush1.msra.mxu0 0.0
        %2496 = vmatprep.subr.mxu0 0.0
        %2497 = vmatpush1.msra.mxu0 0.0
        %2498 = vmatprep.subr.mxu0 0.0
        %2499 = vmatpush1.msra.mxu0 0.0
        %2500 = vmatprep.subr.mxu0 0.0
        %2501 = vmatpush1.msra.mxu0 0.0
        %2502 = vmatprep.mubr.f32.mxu0 0.0
        %2503 = vmatmul.mubr.f32.gmra.mrb[0].mxu0 %v2433
        %v2504 = vpop.f32.mrb[0].mxu0
        %v2505 = vadd.f32 0.0, %v2504
        %v2506 = vpop.f32.mrb[0].mxu0
        %2507 = vmatprep.mubr.f32.mxu0 0.0
        %2508 = vmatmul.mubr.f32.gmra.mrb[0].mxu0 %v2436
        %v2509 = vpop.f32.mrb[0].mxu0
        %v2510 = vadd.f32 0.0, %v2509
        %v2511 = vpop.f32.mrb[0].mxu0
        %2512 = vdwg.mxu0
        %v2514 = vsel %vm1088, %v2421, 0
        %v2517 = vsel %vm1088, %v2423, 0
        %2519 = vmatprep.subr.mxu0 0.0
        %2520 = vmatpush1.msra.mxu0 %v1738
        %2521 = vmatprep.subr.mxu0 0.0
        %2522 = vmatpush1.msra.mxu0 %v1743
        %2523 = vmatprep.subr.mxu0 0.0
        %2524 = vmatpush1.msra.mxu0 0.0
        %2525 = vmatprep.subr.mxu0 0.0
        %2526 = vmatpush1.msra.mxu0 0.0
        %2527 = vmatprep.subr.mxu0 0.0
        %2528 = vmatpush1.msra.mxu0 0.0
        %2529 = vmatprep.subr.mxu0 0.0
        %2530 = vmatpush1.msra.mxu0 0.0
        %2531 = vmatprep.subr.mxu0 0.0
        %2532 = vmatpush1.msra.mxu0 0.0
        %2533 = vmatprep.subr.mxu0 0.0
        %2534 = vmatpush1.msra.mxu0 0.0
        %2535 = vmatprep.subr.mxu0 0.0
        %2536 = vmatpush1.msra.mxu0 0.0
        %2537 = vmatprep.subr.mxu0 0.0
        %2538 = vmatpush1.msra.mxu0 0.0
        %2539 = vmatprep.subr.mxu0 0.0
        %2540 = vmatpush1.msra.mxu0 0.0
        %2541 = vmatprep.subr.mxu0 0.0
        %2542 = vmatpush1.msra.mxu0 0.0
        %2543 = vmatprep.subr.mxu0 0.0
        %2544 = vmatpush1.msra.mxu0 0.0
        %2545 = vmatprep.subr.mxu0 0.0
        %2546 = vmatpush1.msra.mxu0 0.0
        %2547 = vmatprep.subr.mxu0 0.0
        %2548 = vmatpush1.msra.mxu0 0.0
        %2549 = vmatprep.subr.mxu0 0.0
        %2550 = vmatpush1.msra.mxu0 0.0
        %2551 = vmatprep.subr.mxu0 0.0
        %2552 = vmatpush1.msra.mxu0 0.0
        %2553 = vmatprep.subr.mxu0 0.0
        %2554 = vmatpush1.msra.mxu0 0.0
        %2555 = vmatprep.subr.mxu0 0.0
        %2556 = vmatpush1.msra.mxu0 0.0
        %2557 = vmatprep.subr.mxu0 0.0
        %2558 = vmatpush1.msra.mxu0 0.0
        %2559 = vmatprep.subr.mxu0 0.0
        %2560 = vmatpush1.msra.mxu0 0.0
        %2561 = vmatprep.subr.mxu0 0.0
        %2562 = vmatpush1.msra.mxu0 0.0
        %2563 = vmatprep.subr.mxu0 0.0
        %2564 = vmatpush1.msra.mxu0 0.0
        %2565 = vmatprep.subr.mxu0 0.0
        %2566 = vmatpush1.msra.mxu0 0.0
        %2567 = vmatprep.subr.mxu0 0.0
        %2568 = vmatpush1.msra.mxu0 0.0
        %2569 = vmatprep.subr.mxu0 0.0
        %2570 = vmatpush1.msra.mxu0 0.0
        %2571 = vmatprep.subr.mxu0 0.0
        %2572 = vmatpush1.msra.mxu0 0.0
        %2573 = vmatprep.subr.mxu0 0.0
        %2574 = vmatpush1.msra.mxu0 0.0
        %2575 = vmatprep.subr.mxu0 0.0
        %2576 = vmatpush1.msra.mxu0 0.0
        %2577 = vmatprep.subr.mxu0 0.0
        %2578 = vmatpush1.msra.mxu0 0.0
        %2579 = vmatprep.subr.mxu0 0.0
        %2580 = vmatpush1.msra.mxu0 0.0
        %2581 = vmatprep.subr.mxu0 0.0
        %2582 = vmatpush1.msra.mxu0 0.0
        %2583 = vmatprep.mubr.f32.mxu0 0.0
        %2584 = vmatmul.mubr.f32.gmra.mrb[0].mxu0 %v2514
        %v2585 = vpop.f32.mrb[0].mxu0
        %v2586 = vadd.f32 0.0, %v2585
        %v2587 = vpop.f32.mrb[0].mxu0
        %2588 = vmatprep.mubr.f32.mxu0 0.0
        %2589 = vmatmul.mubr.f32.gmra.mrb[0].mxu0 %v2517
        %v2590 = vpop.f32.mrb[0].mxu0
        %v2591 = vadd.f32 0.0, %v2590
        %v2592 = vpop.f32.mrb[0].mxu0
        %2593 = vdwg.mxu0
        %v2595 = vsel %vm1088, %v2425, 0
        %v2598 = vsel %vm1088, %v2427, 0
        %2600 = vmatprep.subr.mxu0 0.0
        %2601 = vmatpush1.msra.mxu0 %v1819
        %2602 = vmatprep.subr.mxu0 0.0
        %2603 = vmatpush1.msra.mxu0 %v1824
        %2604 = vmatprep.subr.mxu0 0.0
        %2605 = vmatpush1.msra.mxu0 0.0
        %2606 = vmatprep.subr.mxu0 0.0
        %2607 = vmatpush1.msra.mxu0 0.0
        %2608 = vmatprep.subr.mxu0 0.0
        %2609 = vmatpush1.msra.mxu0 0.0
        %2610 = vmatprep.subr.mxu0 0.0
        %2611 = vmatpush1.msra.mxu0 0.0
        %2612 = vmatprep.subr.mxu0 0.0
        %2613 = vmatpush1.msra.mxu0 0.0
        %2614 = vmatprep.subr.mxu0 0.0
        %2615 = vmatpush1.msra.mxu0 0.0
        %2616 = vmatprep.subr.mxu0 0.0
        %2617 = vmatpush1.msra.mxu0 0.0
        %2618 = vmatprep.subr.mxu0 0.0
        %2619 = vmatpush1.msra.mxu0 0.0
        %2620 = vmatprep.subr.mxu0 0.0
        %2621 = vmatpush1.msra.mxu0 0.0
        %2622 = vmatprep.subr.mxu0 0.0
        %2623 = vmatpush1.msra.mxu0 0.0
        %2624 = vmatprep.subr.mxu0 0.0
        %2625 = vmatpush1.msra.mxu0 0.0
        %2626 = vmatprep.subr.mxu0 0.0
        %2627 = vmatpush1.msra.mxu0 0.0
        %2628 = vmatprep.subr.mxu0 0.0
        %2629 = vmatpush1.msra.mxu0 0.0
        %2630 = vmatprep.subr.mxu0 0.0
        %2631 = vmatpush1.msra.mxu0 0.0
        %2632 = vmatprep.subr.mxu0 0.0
        %2633 = vmatpush1.msra.mxu0 0.0
        %2634 = vmatprep.subr.mxu0 0.0
        %2635 = vmatpush1.msra.mxu0 0.0
        %2636 = vmatprep.subr.mxu0 0.0
        %2637 = vmatpush1.msra.mxu0 0.0
        %2638 = vmatprep.subr.mxu0 0.0
        %2639 = vmatpush1.msra.mxu0 0.0
        %2640 = vmatprep.subr.mxu0 0.0
        %2641 = vmatpush1.msra.mxu0 0.0
        %2642 = vmatprep.subr.mxu0 0.0
        %2643 = vmatpush1.msra.mxu0 0.0
        %2644 = vmatprep.subr.mxu0 0.0
        %2645 = vmatpush1.msra.mxu0 0.0
        %2646 = vmatprep.subr.mxu0 0.0
        %2647 = vmatpush1.msra.mxu0 0.0
        %2648 = vmatprep.subr.mxu0 0.0
        %2649 = vmatpush1.msra.mxu0 0.0
        %2650 = vmatprep.subr.mxu0 0.0
        %2651 = vmatpush1.msra.mxu0 0.0
        %2652 = vmatprep.subr.mxu0 0.0
        %2653 = vmatpush1.msra.mxu0 0.0
        %2654 = vmatprep.subr.mxu0 0.0
        %2655 = vmatpush1.msra.mxu0 0.0
        %2656 = vmatprep.subr.mxu0 0.0
        %2657 = vmatpush1.msra.mxu0 0.0
        %2658 = vmatprep.subr.mxu0 0.0
        %2659 = vmatpush1.msra.mxu0 0.0
        %2660 = vmatprep.subr.mxu0 0.0
        %2661 = vmatpush1.msra.mxu0 0.0
        %2662 = vmatprep.subr.mxu0 0.0
        %2663 = vmatpush1.msra.mxu0 0.0
        %2664 = vmatprep.mubr.f32.mxu0 0.0
        %2665 = vmatmul.mubr.f32.gmra.mrb[0].mxu0 %v2595
        %v2666 = vpop.f32.mrb[0].mxu0
        %v2667 = vadd.f32 0.0, %v2666
        %v2668 = vpop.f32.mrb[0].mxu0
        %2669 = vmatprep.mubr.f32.mxu0 0.0
        %2670 = vmatmul.mubr.f32.gmra.mrb[0].mxu0 %v2598
        %v2671 = vpop.f32.mrb[0].mxu0
        %v2672 = vadd.f32 0.0, %v2671
        %v2673 = vpop.f32.mrb[0].mxu0
        %2674 = vdwg.mxu0
        %v2676 = vsel %vm1088, %v2429, 0
        %v2679 = vsel %vm1088, %v2431, 0
        %2681 = vmatprep.subr.mxu0 0.0
        %2682 = vmatpush1.msra.mxu0 %v1900
        %2683 = vmatprep.subr.mxu0 0.0
        %2684 = vmatpush1.msra.mxu0 %v1905
        %2685 = vmatprep.subr.mxu0 0.0
        %2686 = vmatpush1.msra.mxu0 0.0
        %2687 = vmatprep.subr.mxu0 0.0
        %2688 = vmatpush1.msra.mxu0 0.0
        %2689 = vmatprep.subr.mxu0 0.0
        %2690 = vmatpush1.msra.mxu0 0.0
        %2691 = vmatprep.subr.mxu0 0.0
        %2692 = vmatpush1.msra.mxu0 0.0
        %2693 = vmatprep.subr.mxu0 0.0
        %2694 = vmatpush1.msra.mxu0 0.0
        %2695 = vmatprep.subr.mxu0 0.0
        %2696 = vmatpush1.msra.mxu0 0.0
        %2697 = vmatprep.subr.mxu0 0.0
        %2698 = vmatpush1.msra.mxu0 0.0
        %2699 = vmatprep.subr.mxu0 0.0
        %2700 = vmatpush1.msra.mxu0 0.0
        %2701 = vmatprep.subr.mxu0 0.0
        %2702 = vmatpush1.msra.mxu0 0.0
        %2703 = vmatprep.subr.mxu0 0.0
        %2704 = vmatpush1.msra.mxu0 0.0
        %2705 = vmatprep.subr.mxu0 0.0
        %2706 = vmatpush1.msra.mxu0 0.0
        %2707 = vmatprep.subr.mxu0 0.0
        %2708 = vmatpush1.msra.mxu0 0.0
        %2709 = vmatprep.subr.mxu0 0.0
        %2710 = vmatpush1.msra.mxu0 0.0
        %2711 = vmatprep.subr.mxu0 0.0
        %2712 = vmatpush1.msra.mxu0 0.0
        %2713 = vmatprep.subr.mxu0 0.0
        %2714 = vmatpush1.msra.mxu0 0.0
        %2715 = vmatprep.subr.mxu0 0.0
        %2716 = vmatpush1.msra.mxu0 0.0
        %2717 = vmatprep.subr.mxu0 0.0
        %2718 = vmatpush1.msra.mxu0 0.0
        %2719 = vmatprep.subr.mxu0 0.0
        %2720 = vmatpush1.msra.mxu0 0.0
        %2721 = vmatprep.subr.mxu0 0.0
        %2722 = vmatpush1.msra.mxu0 0.0
        %2723 = vmatprep.subr.mxu0 0.0
        %2724 = vmatpush1.msra.mxu0 0.0
        %2725 = vmatprep.subr.mxu0 0.0
        %2726 = vmatpush1.msra.mxu0 0.0
        %2727 = vmatprep.subr.mxu0 0.0
        %2728 = vmatpush1.msra.mxu0 0.0
        %2729 = vmatprep.subr.mxu0 0.0
        %2730 = vmatpush1.msra.mxu0 0.0
        %2731 = vmatprep.subr.mxu0 0.0
        %2732 = vmatpush1.msra.mxu0 0.0
        %2733 = vmatprep.subr.mxu0 0.0
        %2734 = vmatpush1.msra.mxu0 0.0
        %2735 = vmatprep.subr.mxu0 0.0
        %2736 = vmatpush1.msra.mxu0 0.0
        %2737 = vmatprep.subr.mxu0 0.0
        %2738 = vmatpush1.msra.mxu0 0.0
        %2739 = vmatprep.subr.mxu0 0.0
        %2740 = vmatpush1.msra.mxu0 0.0
        %2741 = vmatprep.subr.mxu0 0.0
        %2742 = vmatpush1.msra.mxu0 0.0
        %2743 = vmatprep.subr.mxu0 0.0
        %2744 = vmatpush1.msra.mxu0 0.0
        %2745 = vmatprep.mubr.f32.mxu0 0.0
        %2746 = vmatmul.mubr.f32.gmra.mrb[0].mxu0 %v2676
        %v2747 = vpop.f32.mrb[0].mxu0
        %v2748 = vadd.f32 0.0, %v2747
        %v2749 = vpop.f32.mrb[0].mxu0
        %2750 = vmatprep.mubr.f32.mxu0 0.0
        %2751 = vmatmul.mubr.f32.gmra.mrb[0].mxu0 %v2679
        %v2752 = vpop.f32.mrb[0].mxu0
        %v2753 = vadd.f32 0.0, %v2752
        %v2754 = vpop.f32.mrb[0].mxu0
        %2755 = vdwg.mxu0
        %vm2756 = vcmp.gt.f32.partialorder %v2505, 0.0
        %vm2757 = vcmp.gt.f32.partialorder %v2510, 0.0
        %vm2758 = vcmp.gt.f32.partialorder %v2586, 0.0
        %vm2759 = vcmp.gt.f32.partialorder %v2591, 0.0
        %vm2760 = vcmp.gt.f32.partialorder %v2667, 0.0
        %vm2761 = vcmp.gt.f32.partialorder %v2672, 0.0
        %vm2762 = vcmp.gt.f32.partialorder %v2748, 0.0
        %vm2763 = vcmp.gt.f32.partialorder %v2753, 0.0
        %v2764 = vmin.f32 %v2505, 0.0
        %v2765 = vmin.f32 %v2510, 0.0
        %v2766 = vmin.f32 %v2586, 0.0
        %v2767 = vmin.f32 %v2591, 0.0
        %v2768 = vmin.f32 %v2667, 0.0
        %v2769 = vmin.f32 %v2672, 0.0
        %v2770 = vmin.f32 %v2748, 0.0
        %v2771 = vmin.f32 %v2753, 0.0
        %v2772 = vmul.f32 %v2764, 1.442695
        %v2773 = vpow.pop %v2772
        %v2774 = vmul.f32 %v2765, 1.442695
        %v2775 = vpow.pop %v2774
        %v2776 = vmul.f32 %v2766, 1.442695
        %v2777 = vpow.pop %v2776
        %v2778 = vmul.f32 %v2767, 1.442695
        %v2779 = vpow.pop %v2778
        %v2780 = vmul.f32 %v2768, 1.442695
        %v2781 = vpow.pop %v2780
        %v2782 = vmul.f32 %v2769, 1.442695
        %v2783 = vpow.pop %v2782
        %v2784 = vmul.f32 %v2770, 1.442695
        %v2785 = vpow.pop %v2784
        %v2786 = vmul.f32 %v2771, 1.442695
        %v2787 = vpow.pop %v2786
        %v2788 = vsub.f32 %v2773, 1.0
        %v2789 = vsub.f32 %v2775, 1.0
        %v2790 = vsub.f32 %v2777, 1.0
        %v2791 = vsub.f32 %v2779, 1.0
        %v2792 = vsub.f32 %v2781, 1.0
        %v2793 = vsub.f32 %v2783, 1.0
        %v2794 = vsub.f32 %v2785, 1.0
        %v2795 = vsub.f32 %v2787, 1.0
        %v2796 = vsel %vm2756, %v2505, %v2788
        %v2797 = vsel %vm2757, %v2510, %v2789
        %v2798 = vsel %vm2758, %v2586, %v2790
        %v2799 = vsel %vm2759, %v2591, %v2791
        %v2800 = vsel %vm2760, %v2667, %v2792
        %v2801 = vsel %vm2761, %v2672, %v2793
        %v2802 = vsel %vm2762, %v2748, %v2794
        %v2803 = vsel %vm2763, %v2753, %v2795
        %s2804 = scalar_lea.vmem %s286, 64 [#allocation10]
        %2805 = vst.msk [vmem:[%s2804] sm:$0xff] %vm323, %v2796
        %2806 = vst.msk [vmem:[%s2804 + $0x8] sm:$0xff] %vm323, %v2797
        %2807 = vst.msk [vmem:[%s2804 + $0x10] sm:$0xff] %vm323, %v2798
        %2808 = vst.msk [vmem:[%s2804 + $0x18] sm:$0xff] %vm323, %v2799
        %2809 = vst.msk [vmem:[%s2804 + $0x20] sm:$0xff] %vm323, %v2800
        %2810 = vst.msk [vmem:[%s2804 + $0x28] sm:$0xff] %vm323, %v2801
        %2811 = vst.msk [vmem:[%s2804 + $0x30] sm:$0xff] %vm323, %v2802
        %2812 = vst.msk [vmem:[%s2804 + $0x38] sm:$0xff] %vm323, %v2803
        %s2813 = sand.u32 %s142, 1
        %s2814 = scalar_lea.sflag [#allocation4], %s2813
        %s2815 = sand.u32 %s142, 1
        %s2816 = smul.addr %s2815, 128
        %s2817 = scalar_lea.vmem [#allocation10], %s2816
        // Predicated region
        $region57: #{tpu_custom_call.1} parent=39 // pred_check
          %p2818 = pneg %p152
        $region58: #{tpu_custom_call.1} parent=39 // pred_check_branch
          %2820 = sbr.rel (%p2818) target = $region60
        $region59: #{tpu_custom_call.1} parent=39 // pred_region
          %s2822 = ssub.s32 2048, 2048
          %2823 = vsyncadd %s2814, %s2822
          %s2824 = smul.addr %s24, 16
          %s2825 = smul.addr %s2824, 128
          %s2826 = scalar_lea.hbm %s5, %s2825
          %s2827 = sshll.u32 %s2817, 4
          %s2828 = int_to_ptr.vmem [resolvable:$true] %s2827
          %2833 = dma.vmem_to_hbm [thread:$0]  %s2828, 2048, %s2826, %s2814, 128, 128, 8
        $region60: #{tpu_custom_call.1} parent=39 // pred_fallthru
          _
      $region40: #{tpu_custom_call.1} parent=5 // pred_fallthru
        _
      %p2834 = scmp.le.s32.totalorder 2, %s19
      // Predicated region
      $region61: #{tpu_custom_call.1} parent=5 // pred_check
        %p2835 = pneg %p2834
      $region62: #{tpu_custom_call.1} parent=5 // pred_check_branch
        %2837 = sbr.rel (%p2835) target = $region64
      $region63: #{tpu_custom_call.1} parent=5 // pred_region
        %s2838 = ssub.s32 %s19, 2
        // Predicated region
        $region65: #{tpu_custom_call.1} parent=63 // pred_check
          %p2839 = pneg %p158
        $region66: #{tpu_custom_call.1} parent=63 // pred_check_branch
          %2841 = sbr.rel (%p2839) target = $region68
        $region67: #{tpu_custom_call.1} parent=63 // pred_region
          %s2842 = sand.u32 %s143, 1
          %s2843 = scalar_lea.sflag [#allocation4], %s2842
          %s2844 = sand.u32 %s143, 1
          %s2845 = smul.addr %s2844, 128
          %s2846 = scalar_lea.vmem [#allocation10], %s2845
          %2847 = dma.done %s2843, 2048
        $region68: #{tpu_custom_call.1} parent=63 // pred_fallthru
          _
      $region64: #{tpu_custom_call.1} parent=5 // pred_fallthru
        _
    $region6: #{tpu_custom_call.1} parent=1 // loop_footer
      %s23 = sadd.s32 1, %s19
    $region7: #{tpu_custom_call.1} parent=1 // loop_footer_branch
      %18 = sbr.rel target = $region3
    $region8: #{tpu_custom_call.1} parent=1 // loop_exit
      _
    %2848 = vsyncpa [#allocation3], 1
    %s2849 = scalar_lea.sflag [#allocation3], 1
    %2850 = vsyncpa %s2849, 1
    %2851 = vsyncpa [#allocation6], 1
    %2852 = vsyncpa [#allocation9], 1
    %2853 = vsyncpa [#allocation4], 1
    %s2854 = scalar_lea.sflag [#allocation4], 1
    %2855 = vsyncpa %s2854, 1

</llo_original>
